<compile_context>
chip_gen: v6e
topology: v6e:2x2x1
jax: 0.10.0
libtpu: 0.0.40
codegen_flags: <defaults>
</compile_context>

<pallas_src>
import functools
import math

import jax
import jax.numpy as jnp
from jax.experimental import pallas as pl
from jax.experimental.pallas import tpu as pltpu

NEG_SLOPE = 0.1     # nn.LeakyReLU(0.1) used by UnaryBlock
_LANE = 128
_SUBLANE = 8
_TP_MAX = 128       # max points per reduction chunk (bounds unroll + VMEM)


def _round_up(a, m):
    return ((a + m - 1) // m) * m


def _leaky_relu(v):
    return jnp.where(v >= 0, v, NEG_SLOPE * v)


def pids_cls_kernel(x_ref, w_bb_ref, b_bb_ref, w_mlp_ref, b_mlp_ref,
                    w_sm_ref, b_sm_ref, o_ref, acc_ref, *, tp, c_in, inv_p):
    """One grid step = (batch tile b, P-chunk pc).  P-chunks accumulate the
    per-cloud sum of LeakyReLU(x@W + bias) into acc_ref; the heads run on the
    last chunk only."""
    pc = pl.program_id(1)

    @pl.when(pc == 0)
    def _init():
        acc_ref[...] = jnp.zeros_like(acc_ref)

    tb = acc_ref.shape[0]
    c_mid = acc_ref.shape[1]

    # Backbone 'unary' block: Linear(bias=False) + bias + LeakyReLU(0.1),
    # done as c_in broadcast-FMAs on the VPU (K=c_in is tiny -> MXU would sit
    # at ~1% utilization per step).  Weight-row / bias broadcasts are hoisted
    # out of the point loop (JAX does not CSE broadcast_in_dim).
    w_rows = [jnp.broadcast_to(w_bb_ref[c:c + 1, :], (tb, c_mid))
              for c in range(c_in)]
    bias = jnp.broadcast_to(b_bb_ref[...], (tb, c_mid))

    acc = jnp.zeros((tb, c_mid), jnp.float32)
    # Static unroll over the points of this chunk (tp <= _TP_MAX in the normal
    # path).  Each xp load is a small static lane-slice of the lane-dense tile.
    # TODO(synk): very large P that cannot be chunked falls back to tp == P
    # (correct, but the unroll makes compilation slow).
    for p in range(tp):
        xp = x_ref[:, p * c_in:(p + 1) * c_in]          # [tb, c_in] f32
        zp = bias
        for c in range(c_in):
            zp = zp + xp[:, c:c + 1] * w_rows[c]
        acc = acc + _leaky_relu(zp)
    acc_ref[...] += acc

    # 'global_average' + heads: only once per batch tile, on the last P-chunk.
    @pl.when(pc == pl.num_programs(1) - 1)
    def _finalize():
        g = acc_ref[...] * inv_p                        # mean over all P points
        # head_mlp: UnaryBlock(use_bn=False) = Linear + bias + LeakyReLU(0.1)
        m = jnp.dot(g, w_mlp_ref[...], preferred_element_type=jnp.float32)
        m = _leaky_relu(m + b_mlp_ref[...])
        # (config.dropout == 0.0 -> torch F.dropout branch is skipped)
        # head_softmax: UnaryBlock(no_relu=True) = Linear + bias (lane-padded)
        logits = jnp.dot(m, w_sm_ref[...], preferred_element_type=jnp.float32)
        o_ref[...] = (logits + b_sm_ref[...]).astype(o_ref.dtype)


def _pick_tp(P, c_in, tp):
    """Points per P-chunk: tp must divide P and give a lane-aligned x chunk."""
    if tp is not None:
        assert tp == P or (P % tp == 0 and (tp * c_in) % _LANE == 0), (
            "tp must divide P and make tp*c_in a multiple of 128 (or tp == P)")
        return tp
    lane_q = _LANE // math.gcd(c_in, _LANE)   # smallest tp with tp*c_in % 128 == 0
    if P <= _TP_MAX or P % lane_q != 0:
        return P
    best, t = lane_q, lane_q
    while t <= min(P, _TP_MAX):
        if P % t == 0:
            best = t
        t += lane_q
    return best


def _pick_tb(B, tb, per_cloud_bytes, vmem_budget):
    """Clouds per batch step: multiple of 8 (or == B), VMEM-budgeted, and small
    enough to give >= ~4 batch steps (megacore + DMA/compute overlap)."""
    if tb is not None:
        assert tb == B or (tb % _SUBLANE == 0 and 0 < tb <= B), (
            "tb must be a multiple of 8 (or equal to B)")
        return tb
    if B < 2 * _SUBLANE:
        return B                      # too small to split into aligned blocks
    tb_budget = max(_SUBLANE,
                    (vmem_budget // per_cloud_bytes) // _SUBLANE * _SUBLANE)
    tb_steps = _round_up(pl.cdiv(B, 4), _SUBLANE)   # aim for >= 4 batch steps
    return max(_SUBLANE, min(tb_budget, tb_steps))


def pids_classification_forward(x, params, *, tb=None, tp=None):
    """x: [B, P, C_in] float32 point features.  Returns logits [B, num_classes].

    params = (w_bb [C_in, C_mid], b_bb [C_mid], w_mlp [C_mid, H], b_mlp [H],
              w_sm [H, n_cls], b_sm [n_cls]).
    """
    w_bb, b_bb, w_mlp, b_mlp, w_sm, b_sm = params
    B, P, c_in = x.shape
    c_mid = w_bb.shape[1]
    h_dim = w_mlp.shape[1]
    n_cls = w_sm.shape[1]

    b_bb = jnp.asarray(b_bb, jnp.float32).reshape(1, c_mid)
    b_mlp = jnp.asarray(b_mlp, jnp.float32).reshape(1, h_dim)

    # Lane-dense logits: pad the tiny last-layer weight/bias to a multiple of
    # 128 columns (zeros), write a dense [tb, n_out] slab, slice in the wrapper.
    n_out = _round_up(max(n_cls, _LANE), _LANE)
    w_sm_p = jnp.pad(jnp.asarray(w_sm, jnp.float32), ((0, 0), (0, n_out - n_cls)))
    b_sm_p = jnp.pad(jnp.asarray(b_sm, jnp.float32).reshape(1, n_cls),
                     ((0, 0), (0, n_out - n_cls)))

    # Lane-dense x: free contiguous view [B, P*C_in].  No jnp.pad, no bf16 cast
    # (both would add a full extra HBM pass over the dominant array).
    x_flat = jnp.asarray(x, jnp.float32).reshape(B, P * c_in)

    # VMEM-aware tiling (v7x: 64 MiB/TC, v5e/v6e: 128 MiB).
    try:
        vmem_cap = int(pltpu.get_tpu_info().vmem_capacity_bytes)
    except Exception:
        vmem_cap = 64 << 20
    vmem_limit = max(32 << 20, min(vmem_cap * 3 // 4, 96 << 20))

    tp = _pick_tp(P, c_in, tp)
    x_row = _round_up(tp * c_in, _LANE) * 4             # per-cloud x chunk bytes
    mid_row = _round_up(c_mid, _LANE) * 4               # per-cloud acc/h bytes
    per_cloud = 2 * x_row + 8 * mid_row + 2 * _LANE * 4 # dbl-buffered x + margin
    tb = _pick_tb(B, tb, per_cloud, vmem_limit // 2)

    grid = (pl.cdiv(B, tb), P // tp)   # ragged batch tail -> partial blocks
                                       # (junk OOB rows are never written back)

    kernel = functools.partial(pids_cls_kernel, tp=tp, c_in=c_in, inv_p=1.0 / P)

    out = pl.pallas_call(
        kernel,
        out_shape=jax.ShapeDtypeStruct((B, n_out), jnp.float32),
        grid=grid,
        in_specs=[
            pl.BlockSpec((tb, tp * c_in), lambda b, p: (b, p)),
            # weights / biases: full arrays, resident across the grid
            pl.BlockSpec((c_in, c_mid), lambda b, p: (0, 0)),
            pl.BlockSpec((1, c_mid), lambda b, p: (0, 0)),
            pl.BlockSpec((c_mid, h_dim), lambda b, p: (0, 0)),
            pl.BlockSpec((1, h_dim), lambda b, p: (0, 0)),
            pl.BlockSpec((h_dim, n_out), lambda b, p: (0, 0)),
            pl.BlockSpec((1, n_out), lambda b, p: (0, 0)),
        ],
        out_specs=pl.BlockSpec((tb, n_out), lambda b, p: (b, 0)),
        scratch_shapes=[pltpu.VMEM((tb, c_mid), jnp.float32)],
        compiler_params=pltpu.CompilerParams(
            dimension_semantics=("parallel", "arbitrary"),
            vmem_limit_bytes=vmem_limit),
    )(x_flat, jnp.asarray(w_bb, jnp.float32), b_bb,
      jnp.asarray(w_mlp, jnp.float32), b_mlp, w_sm_p, b_sm_p)

    return out[:, :n_cls]


def reference_forward(x, params):
    """Pure-JAX reference of the torch forward (f32 everywhere)."""
    w_bb, b_bb, w_mlp, b_mlp, w_sm, b_sm = params
    hi = jax.lax.Precision.HIGHEST
    h = jnp.einsum('bpc,cm->bpm', x, w_bb, precision=hi) + b_bb.reshape(1, 1, -1)
    h = jnp.where(h >= 0, h, NEG_SLOPE * h)
    g = jnp.mean(h, axis=1)
    m = jnp.dot(g, w_mlp, precision=hi) + b_mlp.reshape(1, -1)
    m = jnp.where(m >= 0, m, NEG_SLOPE * m)
    return jnp.dot(m, w_sm, precision=hi) + b_sm.reshape(1, -1)


if __name__ == "__main__":
    # Small shapes consistent with the module: B point clouds of P points,
    # C_IN point features, unary out_dim=C_MID, head_conv_dim=H, num_classes.
    C_IN, C_MID, H, N_CLS = 4, 32, 64, 8

    key = jax.random.PRNGKey(0)
    ks = jax.random.split(key, 8)
    w_bb = 0.05 * jax.random.normal(ks[0], (C_IN, C_MID), jnp.float32)
    b_bb = 0.05 * jax.random.normal(ks[1], (C_MID,), jnp.float32)
    w_mlp = 0.05 * jax.random.normal(ks[2], (C_MID, H), jnp.float32)
    b_mlp = 0.05 * jax.random.normal(ks[3], (H,), jnp.float32)
    w_sm = 0.05 * jax.random.normal(ks[4], (H, N_CLS), jnp.float32)
    b_sm = 0.05 * jax.random.normal(ks[5], (N_CLS,), jnp.float32)
    params = (w_bb, b_bb, w_mlp, b_mlp, w_sm, b_sm)

    def check(x, **kw):
        out = jax.block_until_ready(pids_classification_forward(x, params, **kw))
        ref = reference_forward(x, params)
        assert out.shape == ref.shape, (out.shape, ref.shape)
        err = float(jnp.max(jnp.abs(out - ref)))
        assert jnp.allclose(out, ref, atol=1e-4, rtol=1e-4), err

    # 1) tiny batch, single block, default tile selection.
    x1 = jax.random.normal(ks[6], (2, 16, C_IN), jnp.float32)
    check(x1)

    # 2) ragged batch + explicit tiles: grid = (3, 2) exercises the remainder
    #    batch block (no jnp.pad) and the P-chunk accumulator.
    x2 = jax.random.normal(ks[7], (20, 64, C_IN), jnp.float32)
    check(x2, tb=8, tp=32)

    # 3) automatic tile selection on a slightly larger case (grid_b = 4).
    x3 = jax.random.normal(jax.random.PRNGKey(1), (32, 128, C_IN), jnp.float32)
    check(x3)

    print("KERNEL_OK")
</pallas_src>

<mosaic_0001>
module attributes {stable_mosaic.version = 11 : i64} {
  func.func @pids_cls_kernel(%arg0: i32, %arg1: i32, %arg2: memref<2x64xf32, #tpu.memory_space<vmem>>, %arg3: memref<4x32xf32, #tpu.memory_space<vmem>>, %arg4: memref<1x32xf32, #tpu.memory_space<vmem>>, %arg5: memref<32x64xf32, #tpu.memory_space<vmem>>, %arg6: memref<1x64xf32, #tpu.memory_space<vmem>>, %arg7: memref<64x128xf32, #tpu.memory_space<vmem>>, %arg8: memref<1x128xf32, #tpu.memory_space<vmem>>, %arg9: memref<2x128xf32, #tpu.memory_space<vmem>>, %arg10: memref<2x32xf32, #tpu.memory_space<vmem>>) attributes {dimension_semantics = [#tpu.dimension_semantics<parallel>, #tpu.dimension_semantics<arbitrary>], iteration_bounds = array<i64: 1, 1>, scalar_prefetch = 0 : i64, scratch_operands = 1 : i64, tpu.core_type = #tpu.core_type<tc>, window_params = [{transform_indices = @transform_0, window_bounds = array<i64: 2, 64>}, {pipeline_mode = #tpu.pipeline_mode<synchronous>, transform_indices = @transform_1, window_bounds = array<i64: 4, 32>}, {pipeline_mode = #tpu.pipeline_mode<synchronous>, transform_indices = @transform_2, window_bounds = array<i64: 1, 32>}, {pipeline_mode = #tpu.pipeline_mode<synchronous>, transform_indices = @transform_3, window_bounds = array<i64: 32, 64>}, {pipeline_mode = #tpu.pipeline_mode<synchronous>, transform_indices = @transform_4, window_bounds = array<i64: 1, 64>}, {pipeline_mode = #tpu.pipeline_mode<synchronous>, transform_indices = @transform_5, window_bounds = array<i64: 64, 128>}, {pipeline_mode = #tpu.pipeline_mode<synchronous>, transform_indices = @transform_6, window_bounds = array<i64: 1, 128>}, {transform_indices = @transform_7, window_bounds = array<i64: 2, 128>}]} {
    %c0_i32 = arith.constant 0 : i32
    %0 = arith.cmpi eq, %arg1, %c0_i32 : i32
    %1 = arith.extui %0 : i1 to i32
    %c0_i32_0 = arith.constant 0 : i32
    %2 = arith.cmpi ne, %1, %c0_i32_0 : i32
    scf.if %2 {
      %cst_62 = arith.constant 0.000000e+00 : f32
      %393 = vector.broadcast %cst_62 : f32 to vector<2x32xf32>
      %c0_63 = arith.constant 0 : index
      %c0_64 = arith.constant 0 : index
      %394 = vector.load %arg10[%c0_63, %c0_64] : memref<2x32xf32, #tpu.memory_space<vmem>>, vector<2x32xf32>
      tpu.vector_store %arg10[%c0_63, %c0_64], %393 {strides = array<i32>} : memref<2x32xf32, #tpu.memory_space<vmem>>, vector<2x32xf32>,
    } else {
    }
    %c0 = arith.constant 0 : index
    %c0_1 = arith.constant 0 : index
    %3 = vector.load %arg3[%c0, %c0_1] : memref<4x32xf32, #tpu.memory_space<vmem>>, vector<1x32xf32>
    %4 = vector.shape_cast %3 : vector<1x32xf32> to vector<1x32xf32>
    %5 = vector.broadcast %4 : vector<1x32xf32> to vector<2x32xf32>
    %c1 = arith.constant 1 : index
    %c0_2 = arith.constant 0 : index
    %6 = vector.load %arg3[%c1, %c0_2] : memref<4x32xf32, #tpu.memory_space<vmem>>, vector<1x32xf32>
    %7 = vector.shape_cast %6 : vector<1x32xf32> to vector<1x32xf32>
    %8 = vector.broadcast %7 : vector<1x32xf32> to vector<2x32xf32>
    %c2 = arith.constant 2 : index
    %c0_3 = arith.constant 0 : index
    %9 = vector.load %arg3[%c2, %c0_3] : memref<4x32xf32, #tpu.memory_space<vmem>>, vector<1x32xf32>
    %10 = vector.shape_cast %9 : vector<1x32xf32> to vector<1x32xf32>
    %11 = vector.broadcast %10 : vector<1x32xf32> to vector<2x32xf32>
    %c3 = arith.constant 3 : index
    %c0_4 = arith.constant 0 : index
    %12 = vector.load %arg3[%c3, %c0_4] : memref<4x32xf32, #tpu.memory_space<vmem>>, vector<1x32xf32>
    %13 = vector.shape_cast %12 : vector<1x32xf32> to vector<1x32xf32>
    %14 = vector.broadcast %13 : vector<1x32xf32> to vector<2x32xf32>
    %c0_5 = arith.constant 0 : index
    %c0_6 = arith.constant 0 : index
    %15 = vector.load %arg4[%c0_5, %c0_6] : memref<1x32xf32, #tpu.memory_space<vmem>>, vector<1x32xf32>
    %16 = vector.shape_cast %15 : vector<1x32xf32> to vector<1x32xf32>
    %17 = vector.broadcast %16 : vector<1x32xf32> to vector<2x32xf32>
    %cst = arith.constant 0.000000e+00 : f32
    %18 = vector.broadcast %cst : f32 to vector<2x32xf32>
    %c0_7 = arith.constant 0 : index
    %c0_8 = arith.constant 0 : index
    %19 = vector.load %arg2[%c0_7, %c0_8] : memref<2x64xf32, #tpu.memory_space<vmem>>, vector<2x4xf32>
    %20 = vector.extract_strided_slice %19 {offsets = [0, 0], sizes = [2, 1], strides = [1, 1]} : vector<2x4xf32> to vector<2x1xf32>
    %21 = vector.broadcast %20 : vector<2x1xf32> to vector<2x32xf32>
    %22 = arith.mulf %21, %5 : vector<2x32xf32>
    %23 = arith.addf %17, %22 : vector<2x32xf32>
    %24 = vector.extract_strided_slice %19 {offsets = [0, 1], sizes = [2, 1], strides = [1, 1]} : vector<2x4xf32> to vector<2x1xf32>
    %25 = vector.broadcast %24 : vector<2x1xf32> to vector<2x32xf32>
    %26 = arith.mulf %25, %8 : vector<2x32xf32>
    %27 = arith.addf %23, %26 : vector<2x32xf32>
    %28 = vector.extract_strided_slice %19 {offsets = [0, 2], sizes = [2, 1], strides = [1, 1]} : vector<2x4xf32> to vector<2x1xf32>
    %29 = vector.broadcast %28 : vector<2x1xf32> to vector<2x32xf32>
    %30 = arith.mulf %29, %11 : vector<2x32xf32>
    %31 = arith.addf %27, %30 : vector<2x32xf32>
    %32 = vector.extract_strided_slice %19 {offsets = [0, 3], sizes = [2, 1], strides = [1, 1]} : vector<2x4xf32> to vector<2x1xf32>
    %33 = vector.broadcast %32 : vector<2x1xf32> to vector<2x32xf32>
    %34 = arith.mulf %33, %14 : vector<2x32xf32>
    %35 = arith.addf %31, %34 : vector<2x32xf32>
    %cst_9 = arith.constant 0.000000e+00 : f32
    %36 = vector.broadcast %cst_9 : f32 to vector<2x32xf32>
    %37 = arith.cmpf oge, %35, %36 : vector<2x32xf32>
    %cst_10 = arith.constant 1.000000e-01 : f32
    %38 = vector.broadcast %cst_10 : f32 to vector<2x32xf32>
    %39 = arith.mulf %38, %35 : vector<2x32xf32>
    %40 = arith.select %37, %35, %39 : vector<2x32xi1>, vector<2x32xf32>
    %41 = arith.addf %18, %40 : vector<2x32xf32>
    %c0_11 = arith.constant 0 : index
    %c4 = arith.constant 4 : index
    %42 = vector.load %arg2[%c0_11, %c4] : memref<2x64xf32, #tpu.memory_space<vmem>>, vector<2x4xf32>
    %43 = vector.extract_strided_slice %42 {offsets = [0, 0], sizes = [2, 1], strides = [1, 1]} : vector<2x4xf32> to vector<2x1xf32>
    %44 = vector.broadcast %43 : vector<2x1xf32> to vector<2x32xf32>
    %45 = arith.mulf %44, %5 : vector<2x32xf32>
    %46 = arith.addf %17, %45 : vector<2x32xf32>
    %47 = vector.extract_strided_slice %42 {offsets = [0, 1], sizes = [2, 1], strides = [1, 1]} : vector<2x4xf32> to vector<2x1xf32>
    %48 = vector.broadcast %47 : vector<2x1xf32> to vector<2x32xf32>
    %49 = arith.mulf %48, %8 : vector<2x32xf32>
    %50 = arith.addf %46, %49 : vector<2x32xf32>
    %51 = vector.extract_strided_slice %42 {offsets = [0, 2], sizes = [2, 1], strides = [1, 1]} : vector<2x4xf32> to vector<2x1xf32>
    %52 = vector.broadcast %51 : vector<2x1xf32> to vector<2x32xf32>
    %53 = arith.mulf %52, %11 : vector<2x32xf32>
    %54 = arith.addf %50, %53 : vector<2x32xf32>
    %55 = vector.extract_strided_slice %42 {offsets = [0, 3], sizes = [2, 1], strides = [1, 1]} : vector<2x4xf32> to vector<2x1xf32>
    %56 = vector.broadcast %55 : vector<2x1xf32> to vector<2x32xf32>
    %57 = arith.mulf %56, %14 : vector<2x32xf32>
    %58 = arith.addf %54, %57 : vector<2x32xf32>
    %cst_12 = arith.constant 0.000000e+00 : f32
    %59 = vector.broadcast %cst_12 : f32 to vector<2x32xf32>
    %60 = arith.cmpf oge, %58, %59 : vector<2x32xf32>
    %cst_13 = arith.constant 1.000000e-01 : f32
    %61 = vector.broadcast %cst_13 : f32 to vector<2x32xf32>
    %62 = arith.mulf %61, %58 : vector<2x32xf32>
    %63 = arith.select %60, %58, %62 : vector<2x32xi1>, vector<2x32xf32>
    %64 = arith.addf %41, %63 : vector<2x32xf32>
    %c0_14 = arith.constant 0 : index
    %c8 = arith.constant 8 : index
    %65 = vector.load %arg2[%c0_14, %c8] : memref<2x64xf32, #tpu.memory_space<vmem>>, vector<2x4xf32>
    %66 = vector.extract_strided_slice %65 {offsets = [0, 0], sizes = [2, 1], strides = [1, 1]} : vector<2x4xf32> to vector<2x1xf32>
    %67 = vector.broadcast %66 : vector<2x1xf32> to vector<2x32xf32>
    %68 = arith.mulf %67, %5 : vector<2x32xf32>
    %69 = arith.addf %17, %68 : vector<2x32xf32>
    %70 = vector.extract_strided_slice %65 {offsets = [0, 1], sizes = [2, 1], strides = [1, 1]} : vector<2x4xf32> to vector<2x1xf32>
    %71 = vector.broadcast %70 : vector<2x1xf32> to vector<2x32xf32>
    %72 = arith.mulf %71, %8 : vector<2x32xf32>
    %73 = arith.addf %69, %72 : vector<2x32xf32>
    %74 = vector.extract_strided_slice %65 {offsets = [0, 2], sizes = [2, 1], strides = [1, 1]} : vector<2x4xf32> to vector<2x1xf32>
    %75 = vector.broadcast %74 : vector<2x1xf32> to vector<2x32xf32>
    %76 = arith.mulf %75, %11 : vector<2x32xf32>
    %77 = arith.addf %73, %76 : vector<2x32xf32>
    %78 = vector.extract_strided_slice %65 {offsets = [0, 3], sizes = [2, 1], strides = [1, 1]} : vector<2x4xf32> to vector<2x1xf32>
    %79 = vector.broadcast %78 : vector<2x1xf32> to vector<2x32xf32>
    %80 = arith.mulf %79, %14 : vector<2x32xf32>
    %81 = arith.addf %77, %80 : vector<2x32xf32>
    %cst_15 = arith.constant 0.000000e+00 : f32
    %82 = vector.broadcast %cst_15 : f32 to vector<2x32xf32>
    %83 = arith.cmpf oge, %81, %82 : vector<2x32xf32>
    %cst_16 = arith.constant 1.000000e-01 : f32
    %84 = vector.broadcast %cst_16 : f32 to vector<2x32xf32>
    %85 = arith.mulf %84, %81 : vector<2x32xf32>
    %86 = arith.select %83, %81, %85 : vector<2x32xi1>, vector<2x32xf32>
    %87 = arith.addf %64, %86 : vector<2x32xf32>
    %c0_17 = arith.constant 0 : index
    %c12 = arith.constant 12 : index
    %88 = vector.load %arg2[%c0_17, %c12] : memref<2x64xf32, #tpu.memory_space<vmem>>, vector<2x4xf32>
    %89 = vector.extract_strided_slice %88 {offsets = [0, 0], sizes = [2, 1], strides = [1, 1]} : vector<2x4xf32> to vector<2x1xf32>
    %90 = vector.broadcast %89 : vector<2x1xf32> to vector<2x32xf32>
    %91 = arith.mulf %90, %5 : vector<2x32xf32>
    %92 = arith.addf %17, %91 : vector<2x32xf32>
    %93 = vector.extract_strided_slice %88 {offsets = [0, 1], sizes = [2, 1], strides = [1, 1]} : vector<2x4xf32> to vector<2x1xf32>
    %94 = vector.broadcast %93 : vector<2x1xf32> to vector<2x32xf32>
    %95 = arith.mulf %94, %8 : vector<2x32xf32>
    %96 = arith.addf %92, %95 : vector<2x32xf32>
    %97 = vector.extract_strided_slice %88 {offsets = [0, 2], sizes = [2, 1], strides = [1, 1]} : vector<2x4xf32> to vector<2x1xf32>
    %98 = vector.broadcast %97 : vector<2x1xf32> to vector<2x32xf32>
    %99 = arith.mulf %98, %11 : vector<2x32xf32>
    %100 = arith.addf %96, %99 : vector<2x32xf32>
    %101 = vector.extract_strided_slice %88 {offsets = [0, 3], sizes = [2, 1], strides = [1, 1]} : vector<2x4xf32> to vector<2x1xf32>
    %102 = vector.broadcast %101 : vector<2x1xf32> to vector<2x32xf32>
    %103 = arith.mulf %102, %14 : vector<2x32xf32>
    %104 = arith.addf %100, %103 : vector<2x32xf32>
    %cst_18 = arith.constant 0.000000e+00 : f32
    %105 = vector.broadcast %cst_18 : f32 to vector<2x32xf32>
    %106 = arith.cmpf oge, %104, %105 : vector<2x32xf32>
    %cst_19 = arith.constant 1.000000e-01 : f32
    %107 = vector.broadcast %cst_19 : f32 to vector<2x32xf32>
    %108 = arith.mulf %107, %104 : vector<2x32xf32>
    %109 = arith.select %106, %104, %108 : vector<2x32xi1>, vector<2x32xf32>
    %110 = arith.addf %87, %109 : vector<2x32xf32>
    %c0_20 = arith.constant 0 : index
    %c16 = arith.constant 16 : index
    %111 = vector.load %arg2[%c0_20, %c16] : memref<2x64xf32, #tpu.memory_space<vmem>>, vector<2x4xf32>
    %112 = vector.extract_strided_slice %111 {offsets = [0, 0], sizes = [2, 1], strides = [1, 1]} : vector<2x4xf32> to vector<2x1xf32>
    %113 = vector.broadcast %112 : vector<2x1xf32> to vector<2x32xf32>
    %114 = arith.mulf %113, %5 : vector<2x32xf32>
    %115 = arith.addf %17, %114 : vector<2x32xf32>
    %116 = vector.extract_strided_slice %111 {offsets = [0, 1], sizes = [2, 1], strides = [1, 1]} : vector<2x4xf32> to vector<2x1xf32>
    %117 = vector.broadcast %116 : vector<2x1xf32> to vector<2x32xf32>
    %118 = arith.mulf %117, %8 : vector<2x32xf32>
    %119 = arith.addf %115, %118 : vector<2x32xf32>
    %120 = vector.extract_strided_slice %111 {offsets = [0, 2], sizes = [2, 1], strides = [1, 1]} : vector<2x4xf32> to vector<2x1xf32>
    %121 = vector.broadcast %120 : vector<2x1xf32> to vector<2x32xf32>
    %122 = arith.mulf %121, %11 : vector<2x32xf32>
    %123 = arith.addf %119, %122 : vector<2x32xf32>
    %124 = vector.extract_strided_slice %111 {offsets = [0, 3], sizes = [2, 1], strides = [1, 1]} : vector<2x4xf32> to vector<2x1xf32>
    %125 = vector.broadcast %124 : vector<2x1xf32> to vector<2x32xf32>
    %126 = arith.mulf %125, %14 : vector<2x32xf32>
    %127 = arith.addf %123, %126 : vector<2x32xf32>
    %cst_21 = arith.constant 0.000000e+00 : f32
    %128 = vector.broadcast %cst_21 : f32 to vector<2x32xf32>
    %129 = arith.cmpf oge, %127, %128 : vector<2x32xf32>
    %cst_22 = arith.constant 1.000000e-01 : f32
    %130 = vector.broadcast %cst_22 : f32 to vector<2x32xf32>
    %131 = arith.mulf %130, %127 : vector<2x32xf32>
    %132 = arith.select %129, %127, %131 : vector<2x32xi1>, vector<2x32xf32>
    %133 = arith.addf %110, %132 : vector<2x32xf32>
    %c0_23 = arith.constant 0 : index
    %c20 = arith.constant 20 : index
    %134 = vector.load %arg2[%c0_23, %c20] : memref<2x64xf32, #tpu.memory_space<vmem>>, vector<2x4xf32>
    %135 = vector.extract_strided_slice %134 {offsets = [0, 0], sizes = [2, 1], strides = [1, 1]} : vector<2x4xf32> to vector<2x1xf32>
    %136 = vector.broadcast %135 : vector<2x1xf32> to vector<2x32xf32>
    %137 = arith.mulf %136, %5 : vector<2x32xf32>
    %138 = arith.addf %17, %137 : vector<2x32xf32>
    %139 = vector.extract_strided_slice %134 {offsets = [0, 1], sizes = [2, 1], strides = [1, 1]} : vector<2x4xf32> to vector<2x1xf32>
    %140 = vector.broadcast %139 : vector<2x1xf32> to vector<2x32xf32>
    %141 = arith.mulf %140, %8 : vector<2x32xf32>
    %142 = arith.addf %138, %141 : vector<2x32xf32>
    %143 = vector.extract_strided_slice %134 {offsets = [0, 2], sizes = [2, 1], strides = [1, 1]} : vector<2x4xf32> to vector<2x1xf32>
    %144 = vector.broadcast %143 : vector<2x1xf32> to vector<2x32xf32>
    %145 = arith.mulf %144, %11 : vector<2x32xf32>
    %146 = arith.addf %142, %145 : vector<2x32xf32>
    %147 = vector.extract_strided_slice %134 {offsets = [0, 3], sizes = [2, 1], strides = [1, 1]} : vector<2x4xf32> to vector<2x1xf32>
    %148 = vector.broadcast %147 : vector<2x1xf32> to vector<2x32xf32>
    %149 = arith.mulf %148, %14 : vector<2x32xf32>
    %150 = arith.addf %146, %149 : vector<2x32xf32>
    %cst_24 = arith.constant 0.000000e+00 : f32
    %151 = vector.broadcast %cst_24 : f32 to vector<2x32xf32>
    %152 = arith.cmpf oge, %150, %151 : vector<2x32xf32>
    %cst_25 = arith.constant 1.000000e-01 : f32
    %153 = vector.broadcast %cst_25 : f32 to vector<2x32xf32>
    %154 = arith.mulf %153, %150 : vector<2x32xf32>
    %155 = arith.select %152, %150, %154 : vector<2x32xi1>, vector<2x32xf32>
    %156 = arith.addf %133, %155 : vector<2x32xf32>
    %c0_26 = arith.constant 0 : index
    %c24 = arith.constant 24 : index
    %157 = vector.load %arg2[%c0_26, %c24] : memref<2x64xf32, #tpu.memory_space<vmem>>, vector<2x4xf32>
    %158 = vector.extract_strided_slice %157 {offsets = [0, 0], sizes = [2, 1], strides = [1, 1]} : vector<2x4xf32> to vector<2x1xf32>
    %159 = vector.broadcast %158 : vector<2x1xf32> to vector<2x32xf32>
    %160 = arith.mulf %159, %5 : vector<2x32xf32>
    %161 = arith.addf %17, %160 : vector<2x32xf32>
    %162 = vector.extract_strided_slice %157 {offsets = [0, 1], sizes = [2, 1], strides = [1, 1]} : vector<2x4xf32> to vector<2x1xf32>
    %163 = vector.broadcast %162 : vector<2x1xf32> to vector<2x32xf32>
    %164 = arith.mulf %163, %8 : vector<2x32xf32>
    %165 = arith.addf %161, %164 : vector<2x32xf32>
    %166 = vector.extract_strided_slice %157 {offsets = [0, 2], sizes = [2, 1], strides = [1, 1]} : vector<2x4xf32> to vector<2x1xf32>
    %167 = vector.broadcast %166 : vector<2x1xf32> to vector<2x32xf32>
    %168 = arith.mulf %167, %11 : vector<2x32xf32>
    %169 = arith.addf %165, %168 : vector<2x32xf32>
    %170 = vector.extract_strided_slice %157 {offsets = [0, 3], sizes = [2, 1], strides = [1, 1]} : vector<2x4xf32> to vector<2x1xf32>
    %171 = vector.broadcast %170 : vector<2x1xf32> to vector<2x32xf32>
    %172 = arith.mulf %171, %14 : vector<2x32xf32>
    %173 = arith.addf %169, %172 : vector<2x32xf32>
    %cst_27 = arith.constant 0.000000e+00 : f32
    %174 = vector.broadcast %cst_27 : f32 to vector<2x32xf32>
    %175 = arith.cmpf oge, %173, %174 : vector<2x32xf32>
    %cst_28 = arith.constant 1.000000e-01 : f32
    %176 = vector.broadcast %cst_28 : f32 to vector<2x32xf32>
    %177 = arith.mulf %176, %173 : vector<2x32xf32>
    %178 = arith.select %175, %173, %177 : vector<2x32xi1>, vector<2x32xf32>
    %179 = arith.addf %156, %178 : vector<2x32xf32>
    %c0_29 = arith.constant 0 : index
    %c28 = arith.constant 28 : index
    %180 = vector.load %arg2[%c0_29, %c28] : memref<2x64xf32, #tpu.memory_space<vmem>>, vector<2x4xf32>
    %181 = vector.extract_strided_slice %180 {offsets = [0, 0], sizes = [2, 1], strides = [1, 1]} : vector<2x4xf32> to vector<2x1xf32>
    %182 = vector.broadcast %181 : vector<2x1xf32> to vector<2x32xf32>
    %183 = arith.mulf %182, %5 : vector<2x32xf32>
    %184 = arith.addf %17, %183 : vector<2x32xf32>
    %185 = vector.extract_strided_slice %180 {offsets = [0, 1], sizes = [2, 1], strides = [1, 1]} : vector<2x4xf32> to vector<2x1xf32>
    %186 = vector.broadcast %185 : vector<2x1xf32> to vector<2x32xf32>
    %187 = arith.mulf %186, %8 : vector<2x32xf32>
    %188 = arith.addf %184, %187 : vector<2x32xf32>
    %189 = vector.extract_strided_slice %180 {offsets = [0, 2], sizes = [2, 1], strides = [1, 1]} : vector<2x4xf32> to vector<2x1xf32>
    %190 = vector.broadcast %189 : vector<2x1xf32> to vector<2x32xf32>
    %191 = arith.mulf %190, %11 : vector<2x32xf32>
    %192 = arith.addf %188, %191 : vector<2x32xf32>
    %193 = vector.extract_strided_slice %180 {offsets = [0, 3], sizes = [2, 1], strides = [1, 1]} : vector<2x4xf32> to vector<2x1xf32>
    %194 = vector.broadcast %193 : vector<2x1xf32> to vector<2x32xf32>
    %195 = arith.mulf %194, %14 : vector<2x32xf32>
    %196 = arith.addf %192, %195 : vector<2x32xf32>
    %cst_30 = arith.constant 0.000000e+00 : f32
    %197 = vector.broadcast %cst_30 : f32 to vector<2x32xf32>
    %198 = arith.cmpf oge, %196, %197 : vector<2x32xf32>
    %cst_31 = arith.constant 1.000000e-01 : f32
    %199 = vector.broadcast %cst_31 : f32 to vector<2x32xf32>
    %200 = arith.mulf %199, %196 : vector<2x32xf32>
    %201 = arith.select %198, %196, %200 : vector<2x32xi1>, vector<2x32xf32>
    %202 = arith.addf %179, %201 : vector<2x32xf32>
    %c0_32 = arith.constant 0 : index
    %c32 = arith.constant 32 : index
    %203 = vector.load %arg2[%c0_32, %c32] : memref<2x64xf32, #tpu.memory_space<vmem>>, vector<2x4xf32>
    %204 = vector.extract_strided_slice %203 {offsets = [0, 0], sizes = [2, 1], strides = [1, 1]} : vector<2x4xf32> to vector<2x1xf32>
    %205 = vector.broadcast %204 : vector<2x1xf32> to vector<2x32xf32>
    %206 = arith.mulf %205, %5 : vector<2x32xf32>
    %207 = arith.addf %17, %206 : vector<2x32xf32>
    %208 = vector.extract_strided_slice %203 {offsets = [0, 1], sizes = [2, 1], strides = [1, 1]} : vector<2x4xf32> to vector<2x1xf32>
    %209 = vector.broadcast %208 : vector<2x1xf32> to vector<2x32xf32>
    %210 = arith.mulf %209, %8 : vector<2x32xf32>
    %211 = arith.addf %207, %210 : vector<2x32xf32>
    %212 = vector.extract_strided_slice %203 {offsets = [0, 2], sizes = [2, 1], strides = [1, 1]} : vector<2x4xf32> to vector<2x1xf32>
    %213 = vector.broadcast %212 : vector<2x1xf32> to vector<2x32xf32>
    %214 = arith.mulf %213, %11 : vector<2x32xf32>
    %215 = arith.addf %211, %214 : vector<2x32xf32>
    %216 = vector.extract_strided_slice %203 {offsets = [0, 3], sizes = [2, 1], strides = [1, 1]} : vector<2x4xf32> to vector<2x1xf32>
    %217 = vector.broadcast %216 : vector<2x1xf32> to vector<2x32xf32>
    %218 = arith.mulf %217, %14 : vector<2x32xf32>
    %219 = arith.addf %215, %218 : vector<2x32xf32>
    %cst_33 = arith.constant 0.000000e+00 : f32
    %220 = vector.broadcast %cst_33 : f32 to vector<2x32xf32>
    %221 = arith.cmpf oge, %219, %220 : vector<2x32xf32>
    %cst_34 = arith.constant 1.000000e-01 : f32
    %222 = vector.broadcast %cst_34 : f32 to vector<2x32xf32>
    %223 = arith.mulf %222, %219 : vector<2x32xf32>
    %224 = arith.select %221, %219, %223 : vector<2x32xi1>, vector<2x32xf32>
    %225 = arith.addf %202, %224 : vector<2x32xf32>
    %c0_35 = arith.constant 0 : index
    %c36 = arith.constant 36 : index
    %226 = vector.load %arg2[%c0_35, %c36] : memref<2x64xf32, #tpu.memory_space<vmem>>, vector<2x4xf32>
    %227 = vector.extract_strided_slice %226 {offsets = [0, 0], sizes = [2, 1], strides = [1, 1]} : vector<2x4xf32> to vector<2x1xf32>
    %228 = vector.broadcast %227 : vector<2x1xf32> to vector<2x32xf32>
    %229 = arith.mulf %228, %5 : vector<2x32xf32>
    %230 = arith.addf %17, %229 : vector<2x32xf32>
    %231 = vector.extract_strided_slice %226 {offsets = [0, 1], sizes = [2, 1], strides = [1, 1]} : vector<2x4xf32> to vector<2x1xf32>
    %232 = vector.broadcast %231 : vector<2x1xf32> to vector<2x32xf32>
    %233 = arith.mulf %232, %8 : vector<2x32xf32>
    %234 = arith.addf %230, %233 : vector<2x32xf32>
    %235 = vector.extract_strided_slice %226 {offsets = [0, 2], sizes = [2, 1], strides = [1, 1]} : vector<2x4xf32> to vector<2x1xf32>
    %236 = vector.broadcast %235 : vector<2x1xf32> to vector<2x32xf32>
    %237 = arith.mulf %236, %11 : vector<2x32xf32>
    %238 = arith.addf %234, %237 : vector<2x32xf32>
    %239 = vector.extract_strided_slice %226 {offsets = [0, 3], sizes = [2, 1], strides = [1, 1]} : vector<2x4xf32> to vector<2x1xf32>
    %240 = vector.broadcast %239 : vector<2x1xf32> to vector<2x32xf32>
    %241 = arith.mulf %240, %14 : vector<2x32xf32>
    %242 = arith.addf %238, %241 : vector<2x32xf32>
    %cst_36 = arith.constant 0.000000e+00 : f32
    %243 = vector.broadcast %cst_36 : f32 to vector<2x32xf32>
    %244 = arith.cmpf oge, %242, %243 : vector<2x32xf32>
    %cst_37 = arith.constant 1.000000e-01 : f32
    %245 = vector.broadcast %cst_37 : f32 to vector<2x32xf32>
    %246 = arith.mulf %245, %242 : vector<2x32xf32>
    %247 = arith.select %244, %242, %246 : vector<2x32xi1>, vector<2x32xf32>
    %248 = arith.addf %225, %247 : vector<2x32xf32>
    %c0_38 = arith.constant 0 : index
    %c40 = arith.constant 40 : index
    %249 = vector.load %arg2[%c0_38, %c40] : memref<2x64xf32, #tpu.memory_space<vmem>>, vector<2x4xf32>
    %250 = vector.extract_strided_slice %249 {offsets = [0, 0], sizes = [2, 1], strides = [1, 1]} : vector<2x4xf32> to vector<2x1xf32>
    %251 = vector.broadcast %250 : vector<2x1xf32> to vector<2x32xf32>
    %252 = arith.mulf %251, %5 : vector<2x32xf32>
    %253 = arith.addf %17, %252 : vector<2x32xf32>
    %254 = vector.extract_strided_slice %249 {offsets = [0, 1], sizes = [2, 1], strides = [1, 1]} : vector<2x4xf32> to vector<2x1xf32>
    %255 = vector.broadcast %254 : vector<2x1xf32> to vector<2x32xf32>
    %256 = arith.mulf %255, %8 : vector<2x32xf32>
    %257 = arith.addf %253, %256 : vector<2x32xf32>
    %258 = vector.extract_strided_slice %249 {offsets = [0, 2], sizes = [2, 1], strides = [1, 1]} : vector<2x4xf32> to vector<2x1xf32>
    %259 = vector.broadcast %258 : vector<2x1xf32> to vector<2x32xf32>
    %260 = arith.mulf %259, %11 : vector<2x32xf32>
    %261 = arith.addf %257, %260 : vector<2x32xf32>
    %262 = vector.extract_strided_slice %249 {offsets = [0, 3], sizes = [2, 1], strides = [1, 1]} : vector<2x4xf32> to vector<2x1xf32>
    %263 = vector.broadcast %262 : vector<2x1xf32> to vector<2x32xf32>
    %264 = arith.mulf %263, %14 : vector<2x32xf32>
    %265 = arith.addf %261, %264 : vector<2x32xf32>
    %cst_39 = arith.constant 0.000000e+00 : f32
    %266 = vector.broadcast %cst_39 : f32 to vector<2x32xf32>
    %267 = arith.cmpf oge, %265, %266 : vector<2x32xf32>
    %cst_40 = arith.constant 1.000000e-01 : f32
    %268 = vector.broadcast %cst_40 : f32 to vector<2x32xf32>
    %269 = arith.mulf %268, %265 : vector<2x32xf32>
    %270 = arith.select %267, %265, %269 : vector<2x32xi1>, vector<2x32xf32>
    %271 = arith.addf %248, %270 : vector<2x32xf32>
    %c0_41 = arith.constant 0 : index
    %c44 = arith.constant 44 : index
    %272 = vector.load %arg2[%c0_41, %c44] : memref<2x64xf32, #tpu.memory_space<vmem>>, vector<2x4xf32>
    %273 = vector.extract_strided_slice %272 {offsets = [0, 0], sizes = [2, 1], strides = [1, 1]} : vector<2x4xf32> to vector<2x1xf32>
    %274 = vector.broadcast %273 : vector<2x1xf32> to vector<2x32xf32>
    %275 = arith.mulf %274, %5 : vector<2x32xf32>
    %276 = arith.addf %17, %275 : vector<2x32xf32>
    %277 = vector.extract_strided_slice %272 {offsets = [0, 1], sizes = [2, 1], strides = [1, 1]} : vector<2x4xf32> to vector<2x1xf32>
    %278 = vector.broadcast %277 : vector<2x1xf32> to vector<2x32xf32>
    %279 = arith.mulf %278, %8 : vector<2x32xf32>
    %280 = arith.addf %276, %279 : vector<2x32xf32>
    %281 = vector.extract_strided_slice %272 {offsets = [0, 2], sizes = [2, 1], strides = [1, 1]} : vector<2x4xf32> to vector<2x1xf32>
    %282 = vector.broadcast %281 : vector<2x1xf32> to vector<2x32xf32>
    %283 = arith.mulf %282, %11 : vector<2x32xf32>
    %284 = arith.addf %280, %283 : vector<2x32xf32>
    %285 = vector.extract_strided_slice %272 {offsets = [0, 3], sizes = [2, 1], strides = [1, 1]} : vector<2x4xf32> to vector<2x1xf32>
    %286 = vector.broadcast %285 : vector<2x1xf32> to vector<2x32xf32>
    %287 = arith.mulf %286, %14 : vector<2x32xf32>
    %288 = arith.addf %284, %287 : vector<2x32xf32>
    %cst_42 = arith.constant 0.000000e+00 : f32
    %289 = vector.broadcast %cst_42 : f32 to vector<2x32xf32>
    %290 = arith.cmpf oge, %288, %289 : vector<2x32xf32>
    %cst_43 = arith.constant 1.000000e-01 : f32
    %291 = vector.broadcast %cst_43 : f32 to vector<2x32xf32>
    %292 = arith.mulf %291, %288 : vector<2x32xf32>
    %293 = arith.select %290, %288, %292 : vector<2x32xi1>, vector<2x32xf32>
    %294 = arith.addf %271, %293 : vector<2x32xf32>
    %c0_44 = arith.constant 0 : index
    %c48 = arith.constant 48 : index
    %295 = vector.load %arg2[%c0_44, %c48] : memref<2x64xf32, #tpu.memory_space<vmem>>, vector<2x4xf32>
    %296 = vector.extract_strided_slice %295 {offsets = [0, 0], sizes = [2, 1], strides = [1, 1]} : vector<2x4xf32> to vector<2x1xf32>
    %297 = vector.broadcast %296 : vector<2x1xf32> to vector<2x32xf32>
    %298 = arith.mulf %297, %5 : vector<2x32xf32>
    %299 = arith.addf %17, %298 : vector<2x32xf32>
    %300 = vector.extract_strided_slice %295 {offsets = [0, 1], sizes = [2, 1], strides = [1, 1]} : vector<2x4xf32> to vector<2x1xf32>
    %301 = vector.broadcast %300 : vector<2x1xf32> to vector<2x32xf32>
    %302 = arith.mulf %301, %8 : vector<2x32xf32>
    %303 = arith.addf %299, %302 : vector<2x32xf32>
    %304 = vector.extract_strided_slice %295 {offsets = [0, 2], sizes = [2, 1], strides = [1, 1]} : vector<2x4xf32> to vector<2x1xf32>
    %305 = vector.broadcast %304 : vector<2x1xf32> to vector<2x32xf32>
    %306 = arith.mulf %305, %11 : vector<2x32xf32>
    %307 = arith.addf %303, %306 : vector<2x32xf32>
    %308 = vector.extract_strided_slice %295 {offsets = [0, 3], sizes = [2, 1], strides = [1, 1]} : vector<2x4xf32> to vector<2x1xf32>
    %309 = vector.broadcast %308 : vector<2x1xf32> to vector<2x32xf32>
    %310 = arith.mulf %309, %14 : vector<2x32xf32>
    %311 = arith.addf %307, %310 : vector<2x32xf32>
    %cst_45 = arith.constant 0.000000e+00 : f32
    %312 = vector.broadcast %cst_45 : f32 to vector<2x32xf32>
    %313 = arith.cmpf oge, %311, %312 : vector<2x32xf32>
    %cst_46 = arith.constant 1.000000e-01 : f32
    %314 = vector.broadcast %cst_46 : f32 to vector<2x32xf32>
    %315 = arith.mulf %314, %311 : vector<2x32xf32>
    %316 = arith.select %313, %311, %315 : vector<2x32xi1>, vector<2x32xf32>
    %317 = arith.addf %294, %316 : vector<2x32xf32>
    %c0_47 = arith.constant 0 : index
    %c52 = arith.constant 52 : index
    %318 = vector.load %arg2[%c0_47, %c52] : memref<2x64xf32, #tpu.memory_space<vmem>>, vector<2x4xf32>
    %319 = vector.extract_strided_slice %318 {offsets = [0, 0], sizes = [2, 1], strides = [1, 1]} : vector<2x4xf32> to vector<2x1xf32>
    %320 = vector.broadcast %319 : vector<2x1xf32> to vector<2x32xf32>
    %321 = arith.mulf %320, %5 : vector<2x32xf32>
    %322 = arith.addf %17, %321 : vector<2x32xf32>
    %323 = vector.extract_strided_slice %318 {offsets = [0, 1], sizes = [2, 1], strides = [1, 1]} : vector<2x4xf32> to vector<2x1xf32>
    %324 = vector.broadcast %323 : vector<2x1xf32> to vector<2x32xf32>
    %325 = arith.mulf %324, %8 : vector<2x32xf32>
    %326 = arith.addf %322, %325 : vector<2x32xf32>
    %327 = vector.extract_strided_slice %318 {offsets = [0, 2], sizes = [2, 1], strides = [1, 1]} : vector<2x4xf32> to vector<2x1xf32>
    %328 = vector.broadcast %327 : vector<2x1xf32> to vector<2x32xf32>
    %329 = arith.mulf %328, %11 : vector<2x32xf32>
    %330 = arith.addf %326, %329 : vector<2x32xf32>
    %331 = vector.extract_strided_slice %318 {offsets = [0, 3], sizes = [2, 1], strides = [1, 1]} : vector<2x4xf32> to vector<2x1xf32>
    %332 = vector.broadcast %331 : vector<2x1xf32> to vector<2x32xf32>
    %333 = arith.mulf %332, %14 : vector<2x32xf32>
    %334 = arith.addf %330, %333 : vector<2x32xf32>
    %cst_48 = arith.constant 0.000000e+00 : f32
    %335 = vector.broadcast %cst_48 : f32 to vector<2x32xf32>
    %336 = arith.cmpf oge, %334, %335 : vector<2x32xf32>
    %cst_49 = arith.constant 1.000000e-01 : f32
    %337 = vector.broadcast %cst_49 : f32 to vector<2x32xf32>
    %338 = arith.mulf %337, %334 : vector<2x32xf32>
    %339 = arith.select %336, %334, %338 : vector<2x32xi1>, vector<2x32xf32>
    %340 = arith.addf %317, %339 : vector<2x32xf32>
    %c0_50 = arith.constant 0 : index
    %c56 = arith.constant 56 : index
    %341 = vector.load %arg2[%c0_50, %c56] : memref<2x64xf32, #tpu.memory_space<vmem>>, vector<2x4xf32>
    %342 = vector.extract_strided_slice %341 {offsets = [0, 0], sizes = [2, 1], strides = [1, 1]} : vector<2x4xf32> to vector<2x1xf32>
    %343 = vector.broadcast %342 : vector<2x1xf32> to vector<2x32xf32>
    %344 = arith.mulf %343, %5 : vector<2x32xf32>
    %345 = arith.addf %17, %344 : vector<2x32xf32>
    %346 = vector.extract_strided_slice %341 {offsets = [0, 1], sizes = [2, 1], strides = [1, 1]} : vector<2x4xf32> to vector<2x1xf32>
    %347 = vector.broadcast %346 : vector<2x1xf32> to vector<2x32xf32>
    %348 = arith.mulf %347, %8 : vector<2x32xf32>
    %349 = arith.addf %345, %348 : vector<2x32xf32>
    %350 = vector.extract_strided_slice %341 {offsets = [0, 2], sizes = [2, 1], strides = [1, 1]} : vector<2x4xf32> to vector<2x1xf32>
    %351 = vector.broadcast %350 : vector<2x1xf32> to vector<2x32xf32>
    %352 = arith.mulf %351, %11 : vector<2x32xf32>
    %353 = arith.addf %349, %352 : vector<2x32xf32>
    %354 = vector.extract_strided_slice %341 {offsets = [0, 3], sizes = [2, 1], strides = [1, 1]} : vector<2x4xf32> to vector<2x1xf32>
    %355 = vector.broadcast %354 : vector<2x1xf32> to vector<2x32xf32>
    %356 = arith.mulf %355, %14 : vector<2x32xf32>
    %357 = arith.addf %353, %356 : vector<2x32xf32>
    %cst_51 = arith.constant 0.000000e+00 : f32
    %358 = vector.broadcast %cst_51 : f32 to vector<2x32xf32>
    %359 = arith.cmpf oge, %357, %358 : vector<2x32xf32>
    %cst_52 = arith.constant 1.000000e-01 : f32
    %360 = vector.broadcast %cst_52 : f32 to vector<2x32xf32>
    %361 = arith.mulf %360, %357 : vector<2x32xf32>
    %362 = arith.select %359, %357, %361 : vector<2x32xi1>, vector<2x32xf32>
    %363 = arith.addf %340, %362 : vector<2x32xf32>
    %c0_53 = arith.constant 0 : index
    %c60 = arith.constant 60 : index
    %364 = vector.load %arg2[%c0_53, %c60] : memref<2x64xf32, #tpu.memory_space<vmem>>, vector<2x4xf32>
    %365 = vector.extract_strided_slice %364 {offsets = [0, 0], sizes = [2, 1], strides = [1, 1]} : vector<2x4xf32> to vector<2x1xf32>
    %366 = vector.broadcast %365 : vector<2x1xf32> to vector<2x32xf32>
    %367 = arith.mulf %366, %5 : vector<2x32xf32>
    %368 = arith.addf %17, %367 : vector<2x32xf32>
    %369 = vector.extract_strided_slice %364 {offsets = [0, 1], sizes = [2, 1], strides = [1, 1]} : vector<2x4xf32> to vector<2x1xf32>
    %370 = vector.broadcast %369 : vector<2x1xf32> to vector<2x32xf32>
    %371 = arith.mulf %370, %8 : vector<2x32xf32>
    %372 = arith.addf %368, %371 : vector<2x32xf32>
    %373 = vector.extract_strided_slice %364 {offsets = [0, 2], sizes = [2, 1], strides = [1, 1]} : vector<2x4xf32> to vector<2x1xf32>
    %374 = vector.broadcast %373 : vector<2x1xf32> to vector<2x32xf32>
    %375 = arith.mulf %374, %11 : vector<2x32xf32>
    %376 = arith.addf %372, %375 : vector<2x32xf32>
    %377 = vector.extract_strided_slice %364 {offsets = [0, 3], sizes = [2, 1], strides = [1, 1]} : vector<2x4xf32> to vector<2x1xf32>
    %378 = vector.broadcast %377 : vector<2x1xf32> to vector<2x32xf32>
    %379 = arith.mulf %378, %14 : vector<2x32xf32>
    %380 = arith.addf %376, %379 : vector<2x32xf32>
    %cst_54 = arith.constant 0.000000e+00 : f32
    %381 = vector.broadcast %cst_54 : f32 to vector<2x32xf32>
    %382 = arith.cmpf oge, %380, %381 : vector<2x32xf32>
    %cst_55 = arith.constant 1.000000e-01 : f32
    %383 = vector.broadcast %cst_55 : f32 to vector<2x32xf32>
    %384 = arith.mulf %383, %380 : vector<2x32xf32>
    %385 = arith.select %382, %380, %384 : vector<2x32xi1>, vector<2x32xf32>
    %386 = arith.addf %363, %385 : vector<2x32xf32>
    %c0_56 = arith.constant 0 : index
    %c0_57 = arith.constant 0 : index
    %387 = vector.load %arg10[%c0_56, %c0_57] : memref<2x32xf32, #tpu.memory_space<vmem>>, vector<2x32xf32>
    %388 = arith.addf %387, %386 : vector<2x32xf32>
    %c0_58 = arith.constant 0 : index
    %c0_59 = arith.constant 0 : index
    %389 = vector.load %arg10[%c0_58, %c0_59] : memref<2x32xf32, #tpu.memory_space<vmem>>, vector<2x32xf32>
    tpu.vector_store %arg10[%c0_58, %c0_59], %388 {strides = array<i32>} : memref<2x32xf32, #tpu.memory_space<vmem>>, vector<2x32xf32>,
    %c0_i32_60 = arith.constant 0 : i32
    %390 = arith.cmpi eq, %arg1, %c0_i32_60 : i32
    %391 = arith.extui %390 : i1 to i32
    %c0_i32_61 = arith.constant 0 : i32
    %392 = arith.cmpi ne, %391, %c0_i32_61 : i32
    scf.if %392 {
      %c0_62 = arith.constant 0 : index
      %c0_63 = arith.constant 0 : index
      %393 = vector.load %arg10[%c0_62, %c0_63] : memref<2x32xf32, #tpu.memory_space<vmem>>, vector<2x32xf32>
      %cst_64 = arith.constant 6.250000e-02 : f32
      %394 = vector.broadcast %cst_64 : f32 to vector<2x32xf32>
      %395 = arith.mulf %393, %394 : vector<2x32xf32>
      %c0_65 = arith.constant 0 : index
      %c0_66 = arith.constant 0 : index
      %396 = vector.load %arg5[%c0_65, %c0_66] : memref<32x64xf32, #tpu.memory_space<vmem>>, vector<32x64xf32>
      %cst_67 = arith.constant dense<0.000000e+00> : vector<2x64xf32>
      %397 = tpu.matmul %395, %396, %cst_67 {dimension_numbers = #tpu.dot_dimension_numbers<[1], [0], [0], [1], [0, 0, 1, 1], [], []>} : vector<2x32xf32>, vector<32x64xf32>, vector<2x64xf32> -> vector<2x64xf32>
      %c0_68 = arith.constant 0 : index
      %c0_69 = arith.constant 0 : index
      %398 = vector.load %arg6[%c0_68, %c0_69] : memref<1x64xf32, #tpu.memory_space<vmem>>, vector<1x64xf32>
      %399 = vector.broadcast %398 : vector<1x64xf32> to vector<2x64xf32>
      %400 = arith.addf %397, %399 : vector<2x64xf32>
      %cst_70 = arith.constant 0.000000e+00 : f32
      %401 = vector.broadcast %cst_70 : f32 to vector<2x64xf32>
      %402 = arith.cmpf oge, %400, %401 : vector<2x64xf32>
      %cst_71 = arith.constant 1.000000e-01 : f32
      %403 = vector.broadcast %cst_71 : f32 to vector<2x64xf32>
      %404 = arith.mulf %403, %400 : vector<2x64xf32>
      %405 = arith.select %402, %400, %404 : vector<2x64xi1>, vector<2x64xf32>
      %c0_72 = arith.constant 0 : index
      %c0_73 = arith.constant 0 : index
      %406 = vector.load %arg7[%c0_72, %c0_73] : memref<64x128xf32, #tpu.memory_space<vmem>>, vector<64x128xf32>
      %cst_74 = arith.constant dense<0.000000e+00> : vector<2x128xf32>
      %407 = tpu.matmul %405, %406, %cst_74 {dimension_numbers = #tpu.dot_dimension_numbers<[1], [0], [0], [1], [0, 0, 1, 1], [], []>} : vector<2x64xf32>, vector<64x128xf32>, vector<2x128xf32> -> vector<2x128xf32>
      %c0_75 = arith.constant 0 : index
      %c0_76 = arith.constant 0 : index
      %408 = vector.load %arg8[%c0_75, %c0_76] : memref<1x128xf32, #tpu.memory_space<vmem>>, vector<1x128xf32>
      %409 = vector.broadcast %408 : vector<1x128xf32> to vector<2x128xf32>
      %410 = arith.addf %407, %409 : vector<2x128xf32>
      %c0_77 = arith.constant 0 : index
      %c0_78 = arith.constant 0 : index
      %411 = vector.load %arg9[%c0_77, %c0_78] : memref<2x128xf32, #tpu.memory_space<vmem>>, vector<2x128xf32>
      tpu.vector_store %arg9[%c0_77, %c0_78], %410 {strides = array<i32>} : memref<2x128xf32, #tpu.memory_space<vmem>>, vector<2x128xf32>,
    } else {
    }
    return
  }
  func.func @transform_0(%arg0: i32, %arg1: i32) -> (i32, i32) {
    %c0_i32 = arith.constant 0 : i32
    return %arg0, %arg1 : i32, i32
  }
  func.func @transform_1(%arg0: i32, %arg1: i32) -> (i32, i32) {
    %c0_i32 = arith.constant 0 : i32
    %c0_i32_0 = arith.constant 0 : i32
    %c0_i32_1 = arith.constant 0 : i32
    return %c0_i32, %c0_i32_0 : i32, i32
  }
  func.func @transform_2(%arg0: i32, %arg1: i32) -> (i32, i32) {
    %c0_i32 = arith.constant 0 : i32
    %c0_i32_0 = arith.constant 0 : i32
    %c0_i32_1 = arith.constant 0 : i32
    return %c0_i32, %c0_i32_0 : i32, i32
  }
  func.func @transform_3(%arg0: i32, %arg1: i32) -> (i32, i32) {
    %c0_i32 = arith.constant 0 : i32
    %c0_i32_0 = arith.constant 0 : i32
    %c0_i32_1 = arith.constant 0 : i32
    return %c0_i32, %c0_i32_0 : i32, i32
  }
  func.func @transform_4(%arg0: i32, %arg1: i32) -> (i32, i32) {
    %c0_i32 = arith.constant 0 : i32
    %c0_i32_0 = arith.constant 0 : i32
    %c0_i32_1 = arith.constant 0 : i32
    return %c0_i32, %c0_i32_0 : i32, i32
  }
  func.func @transform_5(%arg0: i32, %arg1: i32) -> (i32, i32) {
    %c0_i32 = arith.constant 0 : i32
    %c0_i32_0 = arith.constant 0 : i32
    %c0_i32_1 = arith.constant 0 : i32
    return %c0_i32, %c0_i32_0 : i32, i32
  }
  func.func @transform_6(%arg0: i32, %arg1: i32) -> (i32, i32) {
    %c0_i32 = arith.constant 0 : i32
    %c0_i32_0 = arith.constant 0 : i32
    %c0_i32_1 = arith.constant 0 : i32
    return %c0_i32, %c0_i32_0 : i32, i32
  }
  func.func @transform_7(%arg0: i32, %arg1: i32) -> (i32, i32) {
    %c0_i32 = arith.constant 0 : i32
    %c0_i32_0 = arith.constant 0 : i32
    return %arg0, %c0_i32 : i32, i32
  }
}

</mosaic_0001>

<llo_original>
// kernel: tpu_custom_call.1
$region0: #{tpu_custom_call.1}
  #allocation0 [shape = 'u32[]', space=smem, size = 0x4, offset = 0x4, fixed_abs, tag = 'smem constant byte address 0x4 - core index']
  #allocation1 [shape = 'u32[144,128]{1,0:T(1,128)}', space=vmem, size = 0x12000, scoped, tag = 'internal scratch']
  #allocation2 [shape = 'f32[2,32]{1,0:T(2,128)}', space=vmem, size = 0x400, scoped, tag = 'scratch operand']
  %s0 = inlined_call_operand.hbm [shape: f32[2,64], index: 0, kind: input, shape index: {}]
  %s1 = inlined_call_operand.hbm [shape: f32[4,32], index: 1, kind: input, shape index: {}]
  %s2 = inlined_call_operand.vmem [shape: f32[1,32], index: 2, kind: input, shape index: {}]
  %s3 = inlined_call_operand.hbm [shape: f32[32,64], index: 3, kind: input, shape index: {}]
  %s4 = inlined_call_operand.vmem [shape: f32[1,64], index: 4, kind: input, shape index: {}]
  %s5 = inlined_call_operand.hbm [shape: f32[64,128], index: 5, kind: input, shape index: {}]
  %s6 = inlined_call_operand.vmem [shape: f32[1,128], index: 6, kind: input, shape index: {}]
  %s7 = inlined_call_operand.hbm [shape: f32[2,128], index: 7, kind: output, shape index: {}]
  %s8 = sld [smem:[#allocation0]]
  $region62: #{tpu_custom_call.1} parent=0
    _
  %s10 = ssub.s32 1, %s8
  %s11 = scalar_select 0, %s10, %s8
  $region1: #{tpu_custom_call.1} parent=0
    #allocation3 [shape = 'u8[1024]{0}', space=vmem, size = 0x400, scoped, tag = 'input window, operand 0, single buffered']
    #allocation4 [shape = 's32[1]{0}', space=sflag, size = 0x4, scoped, tag = 'scoped memory for tpu_custom_call.1']
    #allocation5 [shape = 's32[1]{0}', space=sflag, size = 0x4, scoped, tag = 'scoped memory for tpu_custom_call.1']
    #allocation6 [shape = 'u8[2048]{0}', space=vmem, size = 0x800, scoped, tag = 'input window, operand 1, single buffered']
    #allocation7 [shape = 's32[1]{0}', space=sflag, size = 0x4, scoped, tag = 'scoped memory for tpu_custom_call.1']
    #allocation8 [shape = 'u8[16384]{0}', space=vmem, size = 0x4000, scoped, tag = 'input window, operand 3, single buffered']
    #allocation9 [shape = 'u8[32768]{0}', space=vmem, size = 0x8000, scoped, tag = 'input window, operand 5, single buffered']
    #allocation10 [shape = 's32[1]{0}', space=sflag, size = 0x4, scoped, tag = 'scoped memory for tpu_custom_call.1']
    #allocation11 [shape = 'u8[1024]{0}', space=vmem, size = 0x400, scoped, tag = 'output window, operand 0, single buffered']
    %12 = vsyncpa [#allocation4], 0
    %13 = vsyncpa [#allocation7], 0
    %14 = vsyncpa [#allocation10], 0
    %15 = vsyncpa [#allocation5], 0
    // Predicated region
    $region2: #{tpu_custom_call.1} parent=1 // pred_check
      _
    $region3: #{tpu_custom_call.1} parent=1 // pred_check_branch
      %17 = sbr.rel (0) target = $region5
    $region4: #{tpu_custom_call.1} parent=1 // pred_region
      %s19 = ssub.s32 32, 32
      %20 = vsyncadd [#allocation4], %s19
      %s22 = sshll.u32 [#allocation3], 4
      %s23 = int_to_ptr.vmem [resolvable:$true] %s22
      %25 = dma.hbm_to_vmem [thread:$0]  %s0, 32, %s23, [#allocation4]
    $region5: #{tpu_custom_call.1} parent=1 // pred_fallthru
      _
    // Predicated region
    $region6: #{tpu_custom_call.1} parent=1 // pred_check
      _
    $region7: #{tpu_custom_call.1} parent=1 // pred_check_branch
      %27 = sbr.rel (0) target = $region9
    $region8: #{tpu_custom_call.1} parent=1 // pred_region
      %s29 = ssub.s32 64, 64
      %30 = vsyncadd [#allocation7], %s29
      %s32 = sshll.u32 [#allocation6], 4
      %s33 = int_to_ptr.vmem [resolvable:$true] %s32
      %35 = dma.hbm_to_vmem [thread:$0]  %s1, 64, %s33, [#allocation7]
    $region9: #{tpu_custom_call.1} parent=1 // pred_fallthru
      _
    // Predicated region
    $region10: #{tpu_custom_call.1} parent=1 // pred_check
      _
    $region11: #{tpu_custom_call.1} parent=1 // pred_check_branch
      %37 = sbr.rel (0) target = $region13
    $region12: #{tpu_custom_call.1} parent=1 // pred_region
      _
    $region13: #{tpu_custom_call.1} parent=1 // pred_fallthru
      _
    // Predicated region
    $region14: #{tpu_custom_call.1} parent=1 // pred_check
      _
    $region15: #{tpu_custom_call.1} parent=1 // pred_check_branch
      %39 = sbr.rel (0) target = $region17
    $region16: #{tpu_custom_call.1} parent=1 // pred_region
      %s41 = ssub.s32 512, 512
      %42 = vsyncadd [#allocation7], %s41
      %s43 = sshll.u32 [#allocation8], 4
      %s44 = int_to_ptr.vmem [resolvable:$true] %s43
      %49 = dma.hbm_to_vmem [thread:$0]  %s3, 512, %s44, [#allocation7], 128, 128, 8
    $region17: #{tpu_custom_call.1} parent=1 // pred_fallthru
      _
    // Predicated region
    $region18: #{tpu_custom_call.1} parent=1 // pred_check
      _
    $region19: #{tpu_custom_call.1} parent=1 // pred_check_branch
      %51 = sbr.rel (0) target = $region21
    $region20: #{tpu_custom_call.1} parent=1 // pred_region
      _
    $region21: #{tpu_custom_call.1} parent=1 // pred_fallthru
      _
    // Predicated region
    $region22: #{tpu_custom_call.1} parent=1 // pred_check
      _
    $region23: #{tpu_custom_call.1} parent=1 // pred_check_branch
      %53 = sbr.rel (0) target = $region25
    $region24: #{tpu_custom_call.1} parent=1 // pred_region
      %s55 = ssub.s32 1024, 1024
      %56 = vsyncadd [#allocation10], %s55
      %s57 = sshll.u32 [#allocation9], 4
      %s58 = int_to_ptr.vmem [resolvable:$true] %s57
      %63 = dma.hbm_to_vmem [thread:$0]  %s5, 1024, %s58, [#allocation10], 128, 128, 8
    $region25: #{tpu_custom_call.1} parent=1 // pred_fallthru
      _
    // Predicated region
    $region26: #{tpu_custom_call.1} parent=1 // pred_check
      _
    $region27: #{tpu_custom_call.1} parent=1 // pred_check_branch
      %65 = sbr.rel (0) target = $region29
    $region28: #{tpu_custom_call.1} parent=1 // pred_region
      _
    $region29: #{tpu_custom_call.1} parent=1 // pred_fallthru
      _
    // Predicated region
    $region30: #{tpu_custom_call.1} parent=1 // pred_check
      _
    $region31: #{tpu_custom_call.1} parent=1 // pred_check_branch
      %67 = sbr.rel (0) target = $region33
    $region32: #{tpu_custom_call.1} parent=1 // pred_region
      %68 = dma.done [#allocation4], 32
    $region33: #{tpu_custom_call.1} parent=1 // pred_fallthru
      _
    // Predicated region
    $region34: #{tpu_custom_call.1} parent=1 // pred_check
      _
    $region35: #{tpu_custom_call.1} parent=1 // pred_check_branch
      %70 = sbr.rel (0) target = $region37
    $region36: #{tpu_custom_call.1} parent=1 // pred_region
      %71 = dma.done [#allocation7], 64
    $region37: #{tpu_custom_call.1} parent=1 // pred_fallthru
      _
    // Predicated region
    $region38: #{tpu_custom_call.1} parent=1 // pred_check
      _
    $region39: #{tpu_custom_call.1} parent=1 // pred_check_branch
      %73 = sbr.rel (0) target = $region41
    $region40: #{tpu_custom_call.1} parent=1 // pred_region
      %74 = dma.done [#allocation7], 512
    $region41: #{tpu_custom_call.1} parent=1 // pred_fallthru
      _
    // Predicated region
    $region42: #{tpu_custom_call.1} parent=1 // pred_check
      _
    $region43: #{tpu_custom_call.1} parent=1 // pred_check_branch
      %76 = sbr.rel (0) target = $region45
    $region44: #{tpu_custom_call.1} parent=1 // pred_region
      %77 = dma.done [#allocation10], 1024
    $region45: #{tpu_custom_call.1} parent=1 // pred_fallthru
      _
    %p78 = scmp.eq.s32.totalorder 0, 0
    // Predicated region
    $region46: #{tpu_custom_call.1} parent=1 // pred_check
      %p79 = pneg %p78
    $region47: #{tpu_custom_call.1} parent=1 // pred_check_branch
      %81 = sbr.rel (%p79) target = $region49
    $region48: #{tpu_custom_call.1} parent=1 // pred_region
      %vm82 = vcmask 254976
      %83 = vst.msk [vmem:[#allocation2] sm:$0x3] %vm82, 0.0
    $region49: #{tpu_custom_call.1} parent=1 // pred_fallthru
      _
    %v84 = vld [vmem:[#allocation6] sm:$0x1]
    %v85 = vlaneseq
    %v86 = vshrl.u32 %v85, 7
    %v87 = vsub.s32 0, %v86
    %v88 = vrot.slane %v84, %v87
    %v89 = vld [vmem:[#allocation6 + $0x1] sm:$0x1]
    %v90 = vlaneseq
    %v91 = vshrl.u32 %v90, 7
    %v92 = vsub.s32 0, %v91
    %v93 = vrot.slane %v89, %v92
    %v94 = vld [vmem:[#allocation6 + $0x2] sm:$0x1]
    %v95 = vlaneseq
    %v96 = vshrl.u32 %v95, 7
    %v97 = vsub.s32 0, %v96
    %v98 = vrot.slane %v94, %v97
    %v99 = vld [vmem:[#allocation6 + $0x3] sm:$0x1]
    %v100 = vlaneseq
    %v101 = vshrl.u32 %v100, 7
    %v102 = vsub.s32 0, %v101
    %v103 = vrot.slane %v99, %v102
    %v104 = vld [vmem:[%s2] sm:$0x1]
    %v106 = vlaneseq
    %v107 = vshrl.u32 %v106, 7
    %v108 = vsub.s32 0, %v107
    %v109 = vrot.slane %v104, %v108
    %v111 = vld [vmem:[#allocation3] sm:$0x3]
    %113 = vset.pattern.permute.xlu0 0
    %114 = vperm.xlu0 %113, %v111
    %v115 = vpop.permute.xlu0 %114
    %v117 = vmul.f32 %v115, %v88
    %v118 = vadd.f32 %v109, %v117
    %119 = vset.pattern.permute.xlu0 1
    %120 = vperm.xlu0 %119, %v111
    %v121 = vpop.permute.xlu0 %120
    %v123 = vmul.f32 %v121, %v93
    %v124 = vadd.f32 %v118, %v123
    %125 = vset.pattern.permute.xlu0 2
    %126 = vperm.xlu0 %125, %v111
    %v127 = vpop.permute.xlu0 %126
    %v129 = vmul.f32 %v127, %v98
    %v130 = vadd.f32 %v124, %v129
    %131 = vset.pattern.permute.xlu0 3
    %132 = vperm.xlu0 %131, %v111
    %v133 = vpop.permute.xlu0 %132
    %v135 = vmul.f32 %v133, %v103
    %v136 = vadd.f32 %v130, %v135
    %vm137 = vcmp.ge.f32.partialorder %v136, 0.0
    %v138 = vmul.f32 %v136, 0.1
    %v139 = vsel %vm137, %v136, %v138
    %v140 = vadd.f32 %v139, 0.0
    %141 = vset.pattern.permute.xlu0 4
    %142 = vperm.xlu0 %141, %v111
    %v143 = vpop.permute.xlu0 %142
    %v145 = vmul.f32 %v143, %v88
    %v146 = vadd.f32 %v109, %v145
    %147 = vset.pattern.permute.xlu0 5
    %148 = vperm.xlu0 %147, %v111
    %v149 = vpop.permute.xlu0 %148
    %v151 = vmul.f32 %v149, %v93
    %v152 = vadd.f32 %v146, %v151
    %153 = vset.pattern.permute.xlu0 6
    %154 = vperm.xlu0 %153, %v111
    %v155 = vpop.permute.xlu0 %154
    %v157 = vmul.f32 %v155, %v98
    %v158 = vadd.f32 %v152, %v157
    %159 = vset.pattern.permute.xlu0 7
    %160 = vperm.xlu0 %159, %v111
    %v161 = vpop.permute.xlu0 %160
    %v163 = vmul.f32 %v161, %v103
    %v164 = vadd.f32 %v158, %v163
    %vm165 = vcmp.ge.f32.partialorder %v164, 0.0
    %v166 = vmul.f32 %v164, 0.1
    %v167 = vsel %vm165, %v164, %v166
    %v168 = vadd.f32 %v140, %v167
    %169 = vset.pattern.permute.xlu0 8
    %170 = vperm.xlu0 %169, %v111
    %v171 = vpop.permute.xlu0 %170
    %v173 = vmul.f32 %v171, %v88
    %v174 = vadd.f32 %v109, %v173
    %175 = vset.pattern.permute.xlu0 9
    %176 = vperm.xlu0 %175, %v111
    %v177 = vpop.permute.xlu0 %176
    %v179 = vmul.f32 %v177, %v93
    %v180 = vadd.f32 %v174, %v179
    %181 = vset.pattern.permute.xlu0 10
    %182 = vperm.xlu0 %181, %v111
    %v183 = vpop.permute.xlu0 %182
    %v185 = vmul.f32 %v183, %v98
    %v186 = vadd.f32 %v180, %v185
    %187 = vset.pattern.permute.xlu0 11
    %188 = vperm.xlu0 %187, %v111
    %v189 = vpop.permute.xlu0 %188
    %v191 = vmul.f32 %v189, %v103
    %v192 = vadd.f32 %v186, %v191
    %vm193 = vcmp.ge.f32.partialorder %v192, 0.0
    %v194 = vmul.f32 %v192, 0.1
    %v195 = vsel %vm193, %v192, %v194
    %v196 = vadd.f32 %v168, %v195
    %197 = vset.pattern.permute.xlu0 12
    %198 = vperm.xlu0 %197, %v111
    %v199 = vpop.permute.xlu0 %198
    %v201 = vmul.f32 %v199, %v88
    %v202 = vadd.f32 %v109, %v201
    %203 = vset.pattern.permute.xlu0 13
    %204 = vperm.xlu0 %203, %v111
    %v205 = vpop.permute.xlu0 %204
    %v207 = vmul.f32 %v205, %v93
    %v208 = vadd.f32 %v202, %v207
    %209 = vset.pattern.permute.xlu0 14
    %210 = vperm.xlu0 %209, %v111
    %v211 = vpop.permute.xlu0 %210
    %v213 = vmul.f32 %v211, %v98
    %v214 = vadd.f32 %v208, %v213
    %215 = vset.pattern.permute.xlu0 15
    %216 = vperm.xlu0 %215, %v111
    %v217 = vpop.permute.xlu0 %216
    %v219 = vmul.f32 %v217, %v103
    %v220 = vadd.f32 %v214, %v219
    %vm221 = vcmp.ge.f32.partialorder %v220, 0.0
    %v222 = vmul.f32 %v220, 0.1
    %v223 = vsel %vm221, %v220, %v222
    %v224 = vadd.f32 %v196, %v223
    %225 = vset.pattern.permute.xlu0 16
    %226 = vperm.xlu0 %225, %v111
    %v227 = vpop.permute.xlu0 %226
    %v229 = vmul.f32 %v227, %v88
    %v230 = vadd.f32 %v109, %v229
    %231 = vset.pattern.permute.xlu0 17
    %232 = vperm.xlu0 %231, %v111
    %v233 = vpop.permute.xlu0 %232
    %v235 = vmul.f32 %v233, %v93
    %v236 = vadd.f32 %v230, %v235
    %237 = vset.pattern.permute.xlu0 18
    %238 = vperm.xlu0 %237, %v111
    %v239 = vpop.permute.xlu0 %238
    %v241 = vmul.f32 %v239, %v98
    %v242 = vadd.f32 %v236, %v241
    %243 = vset.pattern.permute.xlu0 19
    %244 = vperm.xlu0 %243, %v111
    %v245 = vpop.permute.xlu0 %244
    %v247 = vmul.f32 %v245, %v103
    %v248 = vadd.f32 %v242, %v247
    %vm249 = vcmp.ge.f32.partialorder %v248, 0.0
    %v250 = vmul.f32 %v248, 0.1
    %v251 = vsel %vm249, %v248, %v250
    %v252 = vadd.f32 %v224, %v251
    %253 = vset.pattern.permute.xlu0 20
    %254 = vperm.xlu0 %253, %v111
    %v255 = vpop.permute.xlu0 %254
    %v257 = vmul.f32 %v255, %v88
    %v258 = vadd.f32 %v109, %v257
    %259 = vset.pattern.permute.xlu0 21
    %260 = vperm.xlu0 %259, %v111
    %v261 = vpop.permute.xlu0 %260
    %v263 = vmul.f32 %v261, %v93
    %v264 = vadd.f32 %v258, %v263
    %265 = vset.pattern.permute.xlu0 22
    %266 = vperm.xlu0 %265, %v111
    %v267 = vpop.permute.xlu0 %266
    %v269 = vmul.f32 %v267, %v98
    %v270 = vadd.f32 %v264, %v269
    %271 = vset.pattern.permute.xlu0 23
    %272 = vperm.xlu0 %271, %v111
    %v273 = vpop.permute.xlu0 %272
    %v275 = vmul.f32 %v273, %v103
    %v276 = vadd.f32 %v270, %v275
    %vm277 = vcmp.ge.f32.partialorder %v276, 0.0
    %v278 = vmul.f32 %v276, 0.1
    %v279 = vsel %vm277, %v276, %v278
    %v280 = vadd.f32 %v252, %v279
    %281 = vset.pattern.permute.xlu0 24
    %282 = vperm.xlu0 %281, %v111
    %v283 = vpop.permute.xlu0 %282
    %v285 = vmul.f32 %v283, %v88
    %v286 = vadd.f32 %v109, %v285
    %287 = vset.pattern.permute.xlu0 25
    %288 = vperm.xlu0 %287, %v111
    %v289 = vpop.permute.xlu0 %288
    %v291 = vmul.f32 %v289, %v93
    %v292 = vadd.f32 %v286, %v291
    %293 = vset.pattern.permute.xlu0 26
    %294 = vperm.xlu0 %293, %v111
    %v295 = vpop.permute.xlu0 %294
    %v297 = vmul.f32 %v295, %v98
    %v298 = vadd.f32 %v292, %v297
    %299 = vset.pattern.permute.xlu0 27
    %300 = vperm.xlu0 %299, %v111
    %v301 = vpop.permute.xlu0 %300
    %v303 = vmul.f32 %v301, %v103
    %v304 = vadd.f32 %v298, %v303
    %vm305 = vcmp.ge.f32.partialorder %v304, 0.0
    %v306 = vmul.f32 %v304, 0.1
    %v307 = vsel %vm305, %v304, %v306
    %v308 = vadd.f32 %v280, %v307
    %309 = vset.pattern.permute.xlu0 28
    %310 = vperm.xlu0 %309, %v111
    %v311 = vpop.permute.xlu0 %310
    %v313 = vmul.f32 %v311, %v88
    %v314 = vadd.f32 %v109, %v313
    %315 = vset.pattern.permute.xlu0 29
    %316 = vperm.xlu0 %315, %v111
    %v317 = vpop.permute.xlu0 %316
    %v319 = vmul.f32 %v317, %v93
    %v320 = vadd.f32 %v314, %v319
    %321 = vset.pattern.permute.xlu0 30
    %322 = vperm.xlu0 %321, %v111
    %v323 = vpop.permute.xlu0 %322
    %v325 = vmul.f32 %v323, %v98
    %v326 = vadd.f32 %v320, %v325
    %327 = vset.pattern.permute.xlu0 31
    %328 = vperm.xlu0 %327, %v111
    %v329 = vpop.permute.xlu0 %328
    %v331 = vmul.f32 %v329, %v103
    %v332 = vadd.f32 %v326, %v331
    %vm333 = vcmp.ge.f32.partialorder %v332, 0.0
    %v334 = vmul.f32 %v332, 0.1
    %v335 = vsel %vm333, %v332, %v334
    %v336 = vadd.f32 %v308, %v335
    %337 = vset.pattern.permute.xlu0 32
    %338 = vperm.xlu0 %337, %v111
    %v339 = vpop.permute.xlu0 %338
    %v341 = vmul.f32 %v339, %v88
    %v342 = vadd.f32 %v109, %v341
    %343 = vset.pattern.permute.xlu0 33
    %344 = vperm.xlu0 %343, %v111
    %v345 = vpop.permute.xlu0 %344
    %v347 = vmul.f32 %v345, %v93
    %v348 = vadd.f32 %v342, %v347
    %349 = vset.pattern.permute.xlu0 34
    %350 = vperm.xlu0 %349, %v111
    %v351 = vpop.permute.xlu0 %350
    %v353 = vmul.f32 %v351, %v98
    %v354 = vadd.f32 %v348, %v353
    %355 = vset.pattern.permute.xlu0 35
    %356 = vperm.xlu0 %355, %v111
    %v357 = vpop.permute.xlu0 %356
    %v359 = vmul.f32 %v357, %v103
    %v360 = vadd.f32 %v354, %v359
    %vm361 = vcmp.ge.f32.partialorder %v360, 0.0
    %v362 = vmul.f32 %v360, 0.1
    %v363 = vsel %vm361, %v360, %v362
    %v364 = vadd.f32 %v336, %v363
    %365 = vset.pattern.permute.xlu0 36
    %366 = vperm.xlu0 %365, %v111
    %v367 = vpop.permute.xlu0 %366
    %v369 = vmul.f32 %v367, %v88
    %v370 = vadd.f32 %v109, %v369
    %371 = vset.pattern.permute.xlu0 37
    %372 = vperm.xlu0 %371, %v111
    %v373 = vpop.permute.xlu0 %372
    %v375 = vmul.f32 %v373, %v93
    %v376 = vadd.f32 %v370, %v375
    %377 = vset.pattern.permute.xlu0 38
    %378 = vperm.xlu0 %377, %v111
    %v379 = vpop.permute.xlu0 %378
    %v381 = vmul.f32 %v379, %v98
    %v382 = vadd.f32 %v376, %v381
    %383 = vset.pattern.permute.xlu0 39
    %384 = vperm.xlu0 %383, %v111
    %v385 = vpop.permute.xlu0 %384
    %v387 = vmul.f32 %v385, %v103
    %v388 = vadd.f32 %v382, %v387
    %vm389 = vcmp.ge.f32.partialorder %v388, 0.0
    %v390 = vmul.f32 %v388, 0.1
    %v391 = vsel %vm389, %v388, %v390
    %v392 = vadd.f32 %v364, %v391
    %393 = vset.pattern.permute.xlu0 40
    %394 = vperm.xlu0 %393, %v111
    %v395 = vpop.permute.xlu0 %394
    %v397 = vmul.f32 %v395, %v88
    %v398 = vadd.f32 %v109, %v397
    %399 = vset.pattern.permute.xlu0 41
    %400 = vperm.xlu0 %399, %v111
    %v401 = vpop.permute.xlu0 %400
    %v403 = vmul.f32 %v401, %v93
    %v404 = vadd.f32 %v398, %v403
    %405 = vset.pattern.permute.xlu0 42
    %406 = vperm.xlu0 %405, %v111
    %v407 = vpop.permute.xlu0 %406
    %v409 = vmul.f32 %v407, %v98
    %v410 = vadd.f32 %v404, %v409
    %411 = vset.pattern.permute.xlu0 43
    %412 = vperm.xlu0 %411, %v111
    %v413 = vpop.permute.xlu0 %412
    %v415 = vmul.f32 %v413, %v103
    %v416 = vadd.f32 %v410, %v415
    %vm417 = vcmp.ge.f32.partialorder %v416, 0.0
    %v418 = vmul.f32 %v416, 0.1
    %v419 = vsel %vm417, %v416, %v418
    %v420 = vadd.f32 %v392, %v419
    %421 = vset.pattern.permute.xlu0 44
    %422 = vperm.xlu0 %421, %v111
    %v423 = vpop.permute.xlu0 %422
    %v425 = vmul.f32 %v423, %v88
    %v426 = vadd.f32 %v109, %v425
    %427 = vset.pattern.permute.xlu0 45
    %428 = vperm.xlu0 %427, %v111
    %v429 = vpop.permute.xlu0 %428
    %v431 = vmul.f32 %v429, %v93
    %v432 = vadd.f32 %v426, %v431
    %433 = vset.pattern.permute.xlu0 46
    %434 = vperm.xlu0 %433, %v111
    %v435 = vpop.permute.xlu0 %434
    %v437 = vmul.f32 %v435, %v98
    %v438 = vadd.f32 %v432, %v437
    %439 = vset.pattern.permute.xlu0 47
    %440 = vperm.xlu0 %439, %v111
    %v441 = vpop.permute.xlu0 %440
    %v443 = vmul.f32 %v441, %v103
    %v444 = vadd.f32 %v438, %v443
    %vm445 = vcmp.ge.f32.partialorder %v444, 0.0
    %v446 = vmul.f32 %v444, 0.1
    %v447 = vsel %vm445, %v444, %v446
    %v448 = vadd.f32 %v420, %v447
    %449 = vset.pattern.permute.xlu0 48
    %450 = vperm.xlu0 %449, %v111
    %v451 = vpop.permute.xlu0 %450
    %v453 = vmul.f32 %v451, %v88
    %v454 = vadd.f32 %v109, %v453
    %455 = vset.pattern.permute.xlu0 49
    %456 = vperm.xlu0 %455, %v111
    %v457 = vpop.permute.xlu0 %456
    %v459 = vmul.f32 %v457, %v93
    %v460 = vadd.f32 %v454, %v459
    %461 = vset.pattern.permute.xlu0 50
    %462 = vperm.xlu0 %461, %v111
    %v463 = vpop.permute.xlu0 %462
    %v465 = vmul.f32 %v463, %v98
    %v466 = vadd.f32 %v460, %v465
    %467 = vset.pattern.permute.xlu0 51
    %468 = vperm.xlu0 %467, %v111
    %v469 = vpop.permute.xlu0 %468
    %v471 = vmul.f32 %v469, %v103
    %v472 = vadd.f32 %v466, %v471
    %vm473 = vcmp.ge.f32.partialorder %v472, 0.0
    %v474 = vmul.f32 %v472, 0.1
    %v475 = vsel %vm473, %v472, %v474
    %v476 = vadd.f32 %v448, %v475
    %477 = vset.pattern.permute.xlu0 52
    %478 = vperm.xlu0 %477, %v111
    %v479 = vpop.permute.xlu0 %478
    %v481 = vmul.f32 %v479, %v88
    %v482 = vadd.f32 %v109, %v481
    %483 = vset.pattern.permute.xlu0 53
    %484 = vperm.xlu0 %483, %v111
    %v485 = vpop.permute.xlu0 %484
    %v487 = vmul.f32 %v485, %v93
    %v488 = vadd.f32 %v482, %v487
    %489 = vset.pattern.permute.xlu0 54
    %490 = vperm.xlu0 %489, %v111
    %v491 = vpop.permute.xlu0 %490
    %v493 = vmul.f32 %v491, %v98
    %v494 = vadd.f32 %v488, %v493
    %495 = vset.pattern.permute.xlu0 55
    %496 = vperm.xlu0 %495, %v111
    %v497 = vpop.permute.xlu0 %496
    %v499 = vmul.f32 %v497, %v103
    %v500 = vadd.f32 %v494, %v499
    %vm501 = vcmp.ge.f32.partialorder %v500, 0.0
    %v502 = vmul.f32 %v500, 0.1
    %v503 = vsel %vm501, %v500, %v502
    %v504 = vadd.f32 %v476, %v503
    %505 = vset.pattern.permute.xlu0 56
    %506 = vperm.xlu0 %505, %v111
    %v507 = vpop.permute.xlu0 %506
    %v509 = vmul.f32 %v507, %v88
    %v510 = vadd.f32 %v109, %v509
    %511 = vset.pattern.permute.xlu0 57
    %512 = vperm.xlu0 %511, %v111
    %v513 = vpop.permute.xlu0 %512
    %v515 = vmul.f32 %v513, %v93
    %v516 = vadd.f32 %v510, %v515
    %517 = vset.pattern.permute.xlu0 58
    %518 = vperm.xlu0 %517, %v111
    %v519 = vpop.permute.xlu0 %518
    %v521 = vmul.f32 %v519, %v98
    %v522 = vadd.f32 %v516, %v521
    %523 = vset.pattern.permute.xlu0 59
    %524 = vperm.xlu0 %523, %v111
    %v525 = vpop.permute.xlu0 %524
    %v527 = vmul.f32 %v525, %v103
    %v528 = vadd.f32 %v522, %v527
    %vm529 = vcmp.ge.f32.partialorder %v528, 0.0
    %v530 = vmul.f32 %v528, 0.1
    %v531 = vsel %vm529, %v528, %v530
    %v532 = vadd.f32 %v504, %v531
    %533 = vset.pattern.permute.xlu0 60
    %534 = vperm.xlu0 %533, %v111
    %v535 = vpop.permute.xlu0 %534
    %v537 = vmul.f32 %v535, %v88
    %v538 = vadd.f32 %v109, %v537
    %539 = vset.pattern.permute.xlu0 61
    %540 = vperm.xlu0 %539, %v111
    %v541 = vpop.permute.xlu0 %540
    %v543 = vmul.f32 %v541, %v93
    %v544 = vadd.f32 %v538, %v543
    %545 = vset.pattern.permute.xlu0 62
    %546 = vperm.xlu0 %545, %v111
    %v547 = vpop.permute.xlu0 %546
    %v549 = vmul.f32 %v547, %v98
    %v550 = vadd.f32 %v544, %v549
    %551 = vset.pattern.permute.xlu0 63
    %552 = vperm.xlu0 %551, %v111
    %v553 = vpop.permute.xlu0 %552
    %v555 = vmul.f32 %v553, %v103
    %v556 = vadd.f32 %v550, %v555
    %vm557 = vcmp.ge.f32.partialorder %v556, 0.0
    %v558 = vmul.f32 %v556, 0.1
    %v559 = vsel %vm557, %v556, %v558
    %v560 = vadd.f32 %v532, %v559
    %v561 = vld [vmem:[#allocation2] sm:$0x3]
    %v562 = vadd.f32 %v561, %v560
    %vm563 = vcmask 254976
    %564 = vst.msk [vmem:[#allocation2] sm:$0x3] %vm563, %v562
    // Predicated region
    $region50: #{tpu_custom_call.1} parent=1 // pred_check
      %p565 = pneg %p78
    $region51: #{tpu_custom_call.1} parent=1 // pred_check_branch
      %567 = sbr.rel (%p565) target = $region53
    $region52: #{tpu_custom_call.1} parent=1 // pred_region
      %v568 = vld [vmem:[#allocation2] sm:$0x3]
      %v569 = vmul.f32 %v568, 0.0625
      %v570 = vld [vmem:[#allocation8] sm:$0xff]
      %v571 = vld [vmem:[#allocation8 + $0x8] sm:$0xff]
      %v572 = vld [vmem:[#allocation8 + $0x10] sm:$0xff]
      %v573 = vld [vmem:[#allocation8 + $0x18] sm:$0xff]
      %v574 = vld [vmem:[%s4] sm:$0x1]
      %v576 = vlaneseq
      %v577 = vshrl.u32 %v576, 7
      %v578 = vsub.s32 0, %v577
      %v579 = vrot.slane %v574, %v578
      %vm581 = vcmask 261120
      %v583 = vsel %vm581, %v569, 0
      %585 = vmatprep.subr.mxu0 0.0
      %586 = vmatpush1.msra.mxu0 0.0
      %587 = vmatprep.subr.mxu0 0.0
      %588 = vmatpush1.msra.mxu0 0.0
      %589 = vmatprep.subr.mxu0 0.0
      %590 = vmatpush1.msra.mxu0 0.0
      %591 = vmatprep.subr.mxu0 0.0
      %592 = vmatpush1.msra.mxu0 0.0
      %593 = vmatprep.subr.mxu0 0.0
      %594 = vmatpush1.msra.mxu0 0.0
      %595 = vmatprep.subr.mxu0 0.0
      %596 = vmatpush1.msra.mxu0 0.0
      %597 = vmatprep.subr.mxu0 0.0
      %598 = vmatpush1.msra.mxu0 0.0
      %599 = vmatprep.subr.mxu0 0.0
      %600 = vmatpush1.msra.mxu0 0.0
      %601 = vmatprep.subr.mxu0 0.0
      %602 = vmatpush1.msra.mxu0 0.0
      %603 = vmatprep.subr.mxu0 0.0
      %604 = vmatpush1.msra.mxu0 0.0
      %605 = vmatprep.subr.mxu0 0.0
      %606 = vmatpush1.msra.mxu0 0.0
      %607 = vmatprep.subr.mxu0 0.0
      %608 = vmatpush1.msra.mxu0 0.0
      %609 = vmatprep.subr.mxu0 0.0
      %610 = vmatpush1.msra.mxu0 %v573
      %611 = vmatprep.subr.mxu0 0.0
      %612 = vmatpush1.msra.mxu0 %v572
      %613 = vmatprep.subr.mxu0 0.0
      %614 = vmatpush1.msra.mxu0 %v571
      %615 = vmatprep.subr.mxu0 0.0
      %616 = vmatpush1.msra.mxu0 %v570
      %617 = vmatprep.subr.mxu0 0.0
      %618 = vmatpush2.msra.mxu0 0.0
      %619 = vmatprep.subr.mxu0 0.0
      %620 = vmatpush2.msra.mxu0 0.0
      %621 = vmatprep.subr.mxu0 0.0
      %622 = vmatpush2.msra.mxu0 0.0
      %623 = vmatprep.subr.mxu0 0.0
      %624 = vmatpush2.msra.mxu0 0.0
      %625 = vmatprep.subr.mxu0 0.0
      %626 = vmatpush2.msra.mxu0 0.0
      %627 = vmatprep.subr.mxu0 0.0
      %628 = vmatpush2.msra.mxu0 0.0
      %629 = vmatprep.subr.mxu0 0.0
      %630 = vmatpush2.msra.mxu0 0.0
      %631 = vmatprep.subr.mxu0 0.0
      %632 = vmatpush2.msra.mxu0 0.0
      %633 = vmatprep.subr.mxu0 0.0
      %634 = vmatpush2.msra.mxu0 0.0
      %635 = vmatprep.subr.mxu0 0.0
      %636 = vmatpush2.msra.mxu0 0.0
      %637 = vmatprep.subr.mxu0 0.0
      %638 = vmatpush2.msra.mxu0 0.0
      %639 = vmatprep.subr.mxu0 0.0
      %640 = vmatpush2.msra.mxu0 0.0
      %641 = vmatprep.subr.mxu0 0.0
      %642 = vmatpush2.msra.mxu0 0.0
      %643 = vmatprep.subr.mxu0 0.0
      %644 = vmatpush2.msra.mxu0 0.0
      %645 = vmatprep.subr.mxu0 0.0
      %646 = vmatpush2.msra.mxu0 0.0
      %647 = vmatprep.subr.mxu0 0.0
      %648 = vmatpush2.msra.mxu0 0.0
      %649 = vmatprep.mubr.f32.mxu0 0.0
      %650 = vmatmul.mubr.f32.gmra.mxu0 %v583
      %v651 = vpop.f32.mrf.mxu0
      %v652 = vadd.f32 %v579, %v651
      %v653 = vpop.f32.mrf.mxu0
      %654 = vdwg.mxu0
      %vm655 = vcmp.ge.f32.partialorder %v652, 0.0
      %v656 = vmul.f32 %v652, 0.1
      %v657 = vsel %vm655, %v652, %v656
      %v658 = vld [vmem:[#allocation9] sm:$0xff]
      %v659 = vld [vmem:[#allocation9 + $0x8] sm:$0xff]
      %v660 = vld [vmem:[#allocation9 + $0x10] sm:$0xff]
      %v661 = vld [vmem:[#allocation9 + $0x18] sm:$0xff]
      %v662 = vld [vmem:[#allocation9 + $0x20] sm:$0xff]
      %v663 = vld [vmem:[#allocation9 + $0x28] sm:$0xff]
      %v664 = vld [vmem:[#allocation9 + $0x30] sm:$0xff]
      %v665 = vld [vmem:[#allocation9 + $0x38] sm:$0xff]
      %v666 = vld [vmem:[%s6] sm:$0x1]
      %v668 = vlaneseq
      %v669 = vshrl.u32 %v668, 7
      %v670 = vsub.s32 0, %v669
      %v671 = vrot.slane %v666, %v670
      %vm673 = vcmask 523264
      %v675 = vsel %vm673, %v657, 0
      %677 = vmatprep.subr.mxu0 0.0
      %678 = vmatpush1.msra.mxu0 0.0
      %679 = vmatprep.subr.mxu0 0.0
      %680 = vmatpush1.msra.mxu0 0.0
      %681 = vmatprep.subr.mxu0 0.0
      %682 = vmatpush1.msra.mxu0 0.0
      %683 = vmatprep.subr.mxu0 0.0
      %684 = vmatpush1.msra.mxu0 0.0
      %685 = vmatprep.subr.mxu0 0.0
      %686 = vmatpush1.msra.mxu0 0.0
      %687 = vmatprep.subr.mxu0 0.0
      %688 = vmatpush1.msra.mxu0 0.0
      %689 = vmatprep.subr.mxu0 0.0
      %690 = vmatpush1.msra.mxu0 0.0
      %691 = vmatprep.subr.mxu0 0.0
      %692 = vmatpush1.msra.mxu0 0.0
      %693 = vmatprep.subr.mxu0 0.0
      %694 = vmatpush1.msra.mxu0 %v665
      %695 = vmatprep.subr.mxu0 0.0
      %696 = vmatpush1.msra.mxu0 %v664
      %697 = vmatprep.subr.mxu0 0.0
      %698 = vmatpush1.msra.mxu0 %v663
      %699 = vmatprep.subr.mxu0 0.0
      %700 = vmatpush1.msra.mxu0 %v662
      %701 = vmatprep.subr.mxu0 0.0
      %702 = vmatpush1.msra.mxu0 %v661
      %703 = vmatprep.subr.mxu0 0.0
      %704 = vmatpush1.msra.mxu0 %v660
      %705 = vmatprep.subr.mxu0 0.0
      %706 = vmatpush1.msra.mxu0 %v659
      %707 = vmatprep.subr.mxu0 0.0
      %708 = vmatpush1.msra.mxu0 %v658
      %709 = vmatprep.subr.mxu0 0.0
      %710 = vmatpush2.msra.mxu0 0.0
      %711 = vmatprep.subr.mxu0 0.0
      %712 = vmatpush2.msra.mxu0 0.0
      %713 = vmatprep.subr.mxu0 0.0
      %714 = vmatpush2.msra.mxu0 0.0
      %715 = vmatprep.subr.mxu0 0.0
      %716 = vmatpush2.msra.mxu0 0.0
      %717 = vmatprep.subr.mxu0 0.0
      %718 = vmatpush2.msra.mxu0 0.0
      %719 = vmatprep.subr.mxu0 0.0
      %720 = vmatpush2.msra.mxu0 0.0
      %721 = vmatprep.subr.mxu0 0.0
      %722 = vmatpush2.msra.mxu0 0.0
      %723 = vmatprep.subr.mxu0 0.0
      %724 = vmatpush2.msra.mxu0 0.0
      %725 = vmatprep.subr.mxu0 0.0
      %726 = vmatpush2.msra.mxu0 0.0
      %727 = vmatprep.subr.mxu0 0.0
      %728 = vmatpush2.msra.mxu0 0.0
      %729 = vmatprep.subr.mxu0 0.0
      %730 = vmatpush2.msra.mxu0 0.0
      %731 = vmatprep.subr.mxu0 0.0
      %732 = vmatpush2.msra.mxu0 0.0
      %733 = vmatprep.subr.mxu0 0.0
      %734 = vmatpush2.msra.mxu0 0.0
      %735 = vmatprep.subr.mxu0 0.0
      %736 = vmatpush2.msra.mxu0 0.0
      %737 = vmatprep.subr.mxu0 0.0
      %738 = vmatpush2.msra.mxu0 0.0
      %739 = vmatprep.subr.mxu0 0.0
      %740 = vmatpush2.msra.mxu0 0.0
      %741 = vmatprep.mubr.f32.mxu0 0.0
      %742 = vmatmul.mubr.f32.gmra.mxu0 %v675
      %v743 = vpop.f32.mrf.mxu0
      %v744 = vadd.f32 %v671, %v743
      %v745 = vpop.f32.mrf.mxu0
      %746 = vdwg.mxu0
      %747 = vst [vmem:[#allocation11] sm:$0x3] %v744
    $region53: #{tpu_custom_call.1} parent=1 // pred_fallthru
      _
    // Predicated region
    $region54: #{tpu_custom_call.1} parent=1 // pred_check
      _
    $region55: #{tpu_custom_call.1} parent=1 // pred_check_branch
      %749 = sbr.rel (0) target = $region57
    $region56: #{tpu_custom_call.1} parent=1 // pred_region
      %s751 = ssub.s32 32, 32
      %752 = vsyncadd [#allocation5], %s751
      %s754 = sshll.u32 [#allocation11], 4
      %s755 = int_to_ptr.vmem [resolvable:$true] %s754
      %757 = dma.vmem_to_hbm [thread:$0]  %s755, 32, %s7, [#allocation5]
    $region57: #{tpu_custom_call.1} parent=1 // pred_fallthru
      _
    // Predicated region
    $region58: #{tpu_custom_call.1} parent=1 // pred_check
      _
    $region59: #{tpu_custom_call.1} parent=1 // pred_check_branch
      %759 = sbr.rel (0) target = $region61
    $region60: #{tpu_custom_call.1} parent=1 // pred_region
      %760 = dma.done [#allocation5], 32
    $region61: #{tpu_custom_call.1} parent=1 // pred_fallthru
      _
    %761 = vsyncpa [#allocation4], 1
    %762 = vsyncpa [#allocation7], 1
    %763 = vsyncpa [#allocation10], 1
    %764 = vsyncpa [#allocation5], 1

</llo_original>
